<compile_context>
chip_gen: v6e
topology: v6e:2x2x1
jax: 0.10.0
libtpu: 0.0.40
codegen_flags: <defaults>
</compile_context>

<pallas_src>
import math
import jax
import jax.numpy as jnp
from jax.experimental import pallas as pl
from jax.experimental.pallas import tpu as pltpu


def _round_up(x, m):
    return ((x + m - 1) // m) * m


# ----------------------------- fused forward kernel -----------------------------
def make_fused_gru_kernel(num_layers, S, Bp, gs, GW, Tc, unroll):
    """Kernel refs: [x2d, (wih, whh, bi, bh)*L, fcw, fcb] -> out, scratch=(gi[, seq])."""
    n_in = 1 + 4 * num_layers + 2
    chunks = [(c0, min(Tc, S - c0)) for c0 in range(0, S, Tc)]

    def kernel(*refs):
        x_ref = refs[0]
        layer_refs = [tuple(refs[1 + 4 * l: 5 + 4 * l]) for l in range(num_layers)]
        fcw_ref = refs[1 + 4 * num_layers]
        fcb_ref = refs[2 + 4 * num_layers]
        out_ref = refs[n_in]
        gi_scr = refs[n_in + 1]
        seq_scr = refs[n_in + 2] if num_layers > 1 else None

        h = jnp.zeros((Bp, gs), jnp.float32)
        for l in range(num_layers):
            wih_ref, whh_ref, bi_ref, bh_ref = layer_refs[l]
            is_last = (l == num_layers - 1)
            in_ref = x_ref if l == 0 else seq_scr

            # Hoist recurrence-invariants (weight load + bias broadcast) out of the loop.
            whh = whh_ref[...]                                   # (gs, GW)
            bh_b = jnp.broadcast_to(bh_ref[...], (Bp, GW))       # b_hn on n-gate cols, 0 elsewhere

            h = jnp.zeros((Bp, gs), jnp.float32)

            for (c0, clen) in chunks:
                rows = clen * Bp
                # Phase A: input projection for the whole time-chunk (one MXU matmul).
                # bi_ref already contains b_ih (all gates) + b_hh (r,z gates).
                chunk_in = in_ref[pl.ds(c0 * Bp, rows), :]
                gi_scr[pl.ds(0, rows), :] = (
                    jnp.dot(chunk_in, wih_ref[...],
                            preferred_element_type=jnp.float32)
                    + bi_ref[...]
                ).astype(gi_scr.dtype)

                # Phase B: sequential recurrence; h carried in registers (f32).
                def step(t, h, c0=c0, is_last=is_last, whh=whh, bh_b=bh_b):
                    rl = pl.multiple_of(t * Bp, Bp)
                    gi = gi_scr[pl.ds(rl, Bp), :].astype(jnp.float32)         # (Bp, GW)
                    gh = jnp.dot(h.astype(whh.dtype), whh,
                                 preferred_element_type=jnp.float32) + bh_b   # (Bp, GW)
                    rz = jax.nn.sigmoid(gi[:, :2 * gs] + gh[:, :2 * gs])      # fused r|z
                    r = rz[:, :gs]
                    z = rz[:, gs:2 * gs]
                    n = jnp.tanh(gi[:, 2 * gs:3 * gs] + r * gh[:, 2 * gs:3 * gs])
                    h_new = (1.0 - z) * n + z * h
                    if not is_last:
                        rg = pl.multiple_of(c0 * Bp + t * Bp, Bp)
                        seq_scr[pl.ds(rg, Bp), :] = h_new.astype(seq_scr.dtype)
                    return h_new

                h = jax.lax.fori_loop(0, clen, step, h, unroll=unroll)

        # Final Linear on the last hidden state (dropout = identity in eval mode).
        out_ref[...] = (
            jnp.dot(h.astype(fcw_ref.dtype), fcw_ref[...],
                    preferred_element_type=jnp.float32)
            + fcb_ref[...]
        ).astype(out_ref.dtype)

    return kernel


# ------------------------------- parameter packing -------------------------------
def pack_params(params, gs, GW, Op, dtype):
    """Gate-packed / lane-aligned / bias-folded weights for the fused kernel."""
    H = params["hidden_size"]
    O = params["output_size"]

    def place_gates(w_T, rows):
        # (in, 3H) with gate order r|z|n -> (rows, GW), gate g at columns [g*gs, g*gs+H)
        r = w_T.shape[0]
        out = jnp.zeros((rows, GW), jnp.float32)
        for g in range(3):
            out = out.at[:r, g * gs:g * gs + H].set(w_T[:, g * H:(g + 1) * H])
        return out

    packed = []
    for li, lp in enumerate(params["layers"]):
        wih_T = lp["weight_ih"].T          # (in, 3H)
        whh_T = lp["weight_hh"].T          # (H, 3H)
        bih, bhh = lp["bias_ih"], lp["bias_hh"]

        in_rows = wih_T.shape[0] if li == 0 else gs
        wih_p = place_gates(wih_T, in_rows).astype(dtype)
        whh_p = place_gates(whh_T, gs).astype(dtype)

        bi = jnp.zeros((1, GW), jnp.float32)
        for g in range(3):
            v = bih[g * H:(g + 1) * H]
            if g < 2:                       # fold b_hr, b_hz into the input projection
                v = v + bhh[g * H:(g + 1) * H]
            bi = bi.at[0, g * gs:g * gs + H].set(v)
        # b_hn lives inside r*(W_hn h + b_hn): keep it as a full-width gh-bias
        # (zeros on r/z columns) so the per-step add is a single aligned VPU op.
        bh = jnp.zeros((1, GW), jnp.float32).at[0, 2 * gs:2 * gs + H].set(bhh[2 * H:3 * H])

        packed += [wih_p, whh_p, bi, bh]

    fcw_p = jnp.zeros((gs, Op), jnp.float32).at[:H, :O].set(params["fc_w"].T).astype(dtype)
    fcb_p = jnp.zeros((1, Op), jnp.float32).at[0, :O].set(params["fc_b"])
    packed += [fcw_p, fcb_p]
    return packed


# --------------------------------- model wrapper ---------------------------------
def init_params(key, input_size, hidden_size, num_layers, output_size):
    """Deterministic init mimicking PyTorch's U(-1/sqrt(H), 1/sqrt(H))."""
    k = 1.0 / math.sqrt(hidden_size)
    layers = []
    in_sz = input_size
    for _ in range(num_layers):
        key, k0, k1, k2, k3 = jax.random.split(key, 5)
        layers.append({
            "weight_ih": jax.random.uniform(k0, (3 * hidden_size, in_sz), jnp.float32, -k, k),
            "weight_hh": jax.random.uniform(k1, (3 * hidden_size, hidden_size), jnp.float32, -k, k),
            "bias_ih": jax.random.uniform(k2, (3 * hidden_size,), jnp.float32, -k, k),
            "bias_hh": jax.random.uniform(k3, (3 * hidden_size,), jnp.float32, -k, k),
        })
        in_sz = hidden_size
    key, k4, k5 = jax.random.split(key, 3)
    return {
        "hidden_size": hidden_size,
        "num_layers": num_layers,
        "output_size": output_size,
        "layers": layers,
        "fc_w": jax.random.uniform(k4, (output_size, hidden_size), jnp.float32, -k, k),
        "fc_b": jax.random.uniform(k5, (output_size,), jnp.float32, -k, k),
    }


def gru_model_forward(x, params, *, compute_dtype=jnp.bfloat16, time_chunk=64, unroll=8):
    """x: (batch, seq, input_size) -> (batch, output_size)."""
    B, S, I = x.shape
    H = params["hidden_size"]
    L = params["num_layers"]
    O = params["output_size"]
    assert L == len(params["layers"])

    cdtype = jnp.dtype(compute_dtype)
    # Gate packing: if all 3 gates fit in one 128-lane block, use gate stride H
    # (matmul N = 128 instead of 3*128); otherwise pad each gate to 128 lanes.
    gs = H if 3 * H <= 128 else _round_up(H, 128)
    GW = _round_up(3 * gs, 128)        # width of gi / gh / W columns
    Op = _round_up(O, 128)             # lane-dense FC output
    sub = 16 if cdtype.itemsize < 4 else 8
    Bp = _round_up(B, sub)             # sublane-tile-aligned padded batch
    Tc = max(1, min(S, time_chunk))    # time-chunk for the gi scratch

    packed = pack_params(params, gs, GW, Op, cdtype)

    # time-major, batch padded, flattened to (S*Bp, I) in the matmul dtype
    x_t = jnp.transpose(x, (1, 0, 2))
    if Bp != B:
        x_t = jnp.pad(x_t, ((0, 0), (0, Bp - B), (0, 0)))
    x2d = x_t.reshape(S * Bp, I).astype(cdtype)

    n_in = 1 + 4 * L + 2
    scratch = [pltpu.VMEM((Tc * Bp, GW), cdtype)]       # per-chunk gi
    if L > 1:
        scratch.append(pltpu.VMEM((S * Bp, gs), cdtype))  # layer output sequence

    # VMEM budget: sum of inputs + output + scratch, with 2x headroom.
    vmem_bytes = x2d.size * x2d.dtype.itemsize
    for a in packed:
        vmem_bytes += a.size * a.dtype.itemsize
    vmem_bytes += Bp * Op * 4
    vmem_bytes += Tc * Bp * GW * cdtype.itemsize
    if L > 1:
        vmem_bytes += S * Bp * gs * cdtype.itemsize
    vmem_limit = int(min(100 * 2**20, max(16 * 2**20, 2 * vmem_bytes)))

    kernel = make_fused_gru_kernel(L, S, Bp, gs, GW, Tc, unroll)

    out_p = pl.pallas_call(
        kernel,
        out_shape=jax.ShapeDtypeStruct((Bp, Op), jnp.float32),
        in_specs=[pl.BlockSpec(memory_space=pltpu.MemorySpace.VMEM)] * n_in,
        out_specs=pl.BlockSpec(memory_space=pltpu.MemorySpace.VMEM),
        scratch_shapes=scratch,
        compiler_params=pltpu.CompilerParams(vmem_limit_bytes=vmem_limit),
    )(x2d, *packed)

    return out_p[:B, :O]


# ------------------------------- pure-JAX reference -------------------------------
def gru_model_ref(x, params):
    H = params["hidden_size"]
    B = x.shape[0]
    h_seq = jnp.transpose(x, (1, 0, 2))   # (S, B, I)
    for lp in params["layers"]:
        wih_T, whh_T = lp["weight_ih"].T, lp["weight_hh"].T
        bih, bhh = lp["bias_ih"], lp["bias_hh"]

        def step(h, x_t, wih_T=wih_T, whh_T=whh_T, bih=bih, bhh=bhh):
            gi = x_t @ wih_T + bih
            gh = h @ whh_T + bhh
            r = jax.nn.sigmoid(gi[:, :H] + gh[:, :H])
            z = jax.nn.sigmoid(gi[:, H:2 * H] + gh[:, H:2 * H])
            n = jnp.tanh(gi[:, 2 * H:] + r * gh[:, 2 * H:])
            h_new = (1.0 - z) * n + z * h
            return h_new, h_new

        h0 = jnp.zeros((B, H), jnp.float32)
        _, h_seq = jax.lax.scan(step, h0, h_seq)
    last = h_seq[-1]
    return last @ params["fc_w"].T + params["fc_b"][None, :]


# -------------------------------------- main --------------------------------------
if __name__ == "__main__":
    batch, seq, input_size = 2, 8, 8
    hidden_size, num_layers, output_size = 32, 2, 1

    key = jax.random.PRNGKey(0)
    key, kx, kp = jax.random.split(key, 3)
    x = jax.random.normal(kx, (batch, seq, input_size), jnp.float32)
    params = init_params(kp, input_size, hidden_size, num_layers, output_size)

    ref = gru_model_ref(x, params)

    # f32 path: exact-ish parity with the reference.
    out_f32 = jax.block_until_ready(gru_model_forward(x, params, compute_dtype=jnp.float32))
    assert out_f32.shape == (batch, output_size), out_f32.shape
    assert jnp.allclose(out_f32, ref, atol=3e-5, rtol=3e-5), (out_f32, ref)

    # bf16-operand path (default, MXU-native): dtype-level tolerance.
    out_bf16 = jax.block_until_ready(gru_model_forward(x, params))
    assert out_bf16.shape == (batch, output_size), out_bf16.shape
    assert jnp.allclose(out_bf16, ref, atol=5e-2, rtol=5e-2), (out_bf16, ref)

    print("KERNEL_OK")
</pallas_src>

<mosaic_0001>
module attributes {stable_mosaic.version = 11 : i64} {
  func.func @kernel(%arg0: memref<64x8xf32, #tpu.memory_space<vmem>>, %arg1: memref<8x128xf32, #tpu.memory_space<vmem>>, %arg2: memref<32x128xf32, #tpu.memory_space<vmem>>, %arg3: memref<1x128xf32, #tpu.memory_space<vmem>>, %arg4: memref<1x128xf32, #tpu.memory_space<vmem>>, %arg5: memref<32x128xf32, #tpu.memory_space<vmem>>, %arg6: memref<32x128xf32, #tpu.memory_space<vmem>>, %arg7: memref<1x128xf32, #tpu.memory_space<vmem>>, %arg8: memref<1x128xf32, #tpu.memory_space<vmem>>, %arg9: memref<32x128xf32, #tpu.memory_space<vmem>>, %arg10: memref<1x128xf32, #tpu.memory_space<vmem>>, %arg11: memref<8x128xf32, #tpu.memory_space<vmem>>, %arg12: memref<64x128xf32, #tpu.memory_space<vmem>>, %arg13: memref<64x32xf32, #tpu.memory_space<vmem>>) attributes {dimension_semantics = [], scalar_prefetch = 0 : i64, scratch_operands = 2 : i64, tpu.core_type = #tpu.core_type<tc>} {
    %c0 = arith.constant 0 : index
    %c0_0 = arith.constant 0 : index
    %0 = vector.load %arg2[%c0, %c0_0] : memref<32x128xf32, #tpu.memory_space<vmem>>, vector<32x128xf32>
    %c0_1 = arith.constant 0 : index
    %c0_2 = arith.constant 0 : index
    %1 = vector.load %arg4[%c0_1, %c0_2] : memref<1x128xf32, #tpu.memory_space<vmem>>, vector<1x128xf32>
    %2 = vector.shape_cast %1 : vector<1x128xf32> to vector<1x128xf32>
    %3 = vector.broadcast %2 : vector<1x128xf32> to vector<8x128xf32>
    %cst = arith.constant 0.000000e+00 : f32
    %4 = vector.broadcast %cst : f32 to vector<8x32xf32>
    %c0_3 = arith.constant 0 : index
    %c0_4 = arith.constant 0 : index
    %5 = vector.load %arg0[%c0_3, %c0_4] : memref<64x8xf32, #tpu.memory_space<vmem>>, vector<64x8xf32>
    %c0_5 = arith.constant 0 : index
    %c0_6 = arith.constant 0 : index
    %6 = vector.load %arg1[%c0_5, %c0_6] : memref<8x128xf32, #tpu.memory_space<vmem>>, vector<8x128xf32>
    %cst_7 = arith.constant dense<0.000000e+00> : vector<64x128xf32>
    %7 = tpu.matmul %5, %6, %cst_7 {dimension_numbers = #tpu.dot_dimension_numbers<[1], [0], [0], [1], [0, 0, 1, 1], [], []>} : vector<64x8xf32>, vector<8x128xf32>, vector<64x128xf32> -> vector<64x128xf32>
    %c0_8 = arith.constant 0 : index
    %c0_9 = arith.constant 0 : index
    %8 = vector.load %arg3[%c0_8, %c0_9] : memref<1x128xf32, #tpu.memory_space<vmem>>, vector<1x128xf32>
    %9 = vector.broadcast %8 : vector<1x128xf32> to vector<64x128xf32>
    %10 = arith.addf %7, %9 : vector<64x128xf32>
    %c0_10 = arith.constant 0 : index
    %c0_11 = arith.constant 0 : index
    %11 = vector.load %arg12[%c0_10, %c0_11] : memref<64x128xf32, #tpu.memory_space<vmem>>, vector<64x128xf32>
    tpu.vector_store %arg12[%c0_10, %c0_11], %10 {strides = array<i32>} : memref<64x128xf32, #tpu.memory_space<vmem>>, vector<64x128xf32>,
    %c0_i32 = arith.constant 0 : i32
    %c8_i32 = arith.constant 8 : i32
    %12 = arith.muli %c0_i32, %c8_i32 : i32
    %13 = tpu.assume_multiple %12, 8 : i32
    %14 = arith.index_cast %13 : i32 to index
    %c0_12 = arith.constant 0 : index
    %15 = vector.load %arg12[%14, %c0_12] : memref<64x128xf32, #tpu.memory_space<vmem>>, vector<8x128xf32>
    %cst_13 = arith.constant dense<0.000000e+00> : vector<8x128xf32>
    %16 = tpu.matmul %4, %0, %cst_13 {dimension_numbers = #tpu.dot_dimension_numbers<[1], [0], [0], [1], [0, 0, 1, 1], [], []>} : vector<8x32xf32>, vector<32x128xf32>, vector<8x128xf32> -> vector<8x128xf32>
    %17 = arith.addf %16, %3 : vector<8x128xf32>
    %18 = vector.extract_strided_slice %15 {offsets = [0, 0], sizes = [8, 64], strides = [1, 1]} : vector<8x128xf32> to vector<8x64xf32>
    %19 = vector.extract_strided_slice %17 {offsets = [0, 0], sizes = [8, 64], strides = [1, 1]} : vector<8x128xf32> to vector<8x64xf32>
    %20 = arith.addf %18, %19 : vector<8x64xf32>
    %21 = arith.negf %20 : vector<8x64xf32>
    %22 = math.exp %21 : vector<8x64xf32>
    %cst_14 = arith.constant 1.000000e+00 : f32
    %23 = vector.broadcast %cst_14 : f32 to vector<8x64xf32>
    %24 = arith.addf %23, %22 : vector<8x64xf32>
    %25 = arith.divf %23, %24 : vector<8x64xf32>
    %26 = vector.extract_strided_slice %25 {offsets = [0, 0], sizes = [8, 32], strides = [1, 1]} : vector<8x64xf32> to vector<8x32xf32>
    %27 = vector.extract_strided_slice %25 {offsets = [0, 32], sizes = [8, 32], strides = [1, 1]} : vector<8x64xf32> to vector<8x32xf32>
    %28 = vector.extract_strided_slice %15 {offsets = [0, 64], sizes = [8, 32], strides = [1, 1]} : vector<8x128xf32> to vector<8x32xf32>
    %29 = vector.extract_strided_slice %17 {offsets = [0, 64], sizes = [8, 32], strides = [1, 1]} : vector<8x128xf32> to vector<8x32xf32>
    %30 = arith.mulf %26, %29 : vector<8x32xf32>
    %31 = arith.addf %28, %30 : vector<8x32xf32>
    %32 = math.tanh %31 : vector<8x32xf32>
    %cst_15 = arith.constant 1.000000e+00 : f32
    %33 = vector.broadcast %cst_15 : f32 to vector<8x32xf32>
    %34 = arith.subf %33, %27 : vector<8x32xf32>
    %35 = arith.mulf %34, %32 : vector<8x32xf32>
    %36 = arith.mulf %27, %4 : vector<8x32xf32>
    %37 = arith.addf %35, %36 : vector<8x32xf32>
    %c8_i32_16 = arith.constant 8 : i32
    %38 = arith.muli %c0_i32, %c8_i32_16 : i32
    %c0_i32_17 = arith.constant 0 : i32
    %39 = arith.addi %c0_i32_17, %38 : i32
    %40 = tpu.assume_multiple %39, 8 : i32
    %41 = arith.index_cast %40 : i32 to index
    %c0_18 = arith.constant 0 : index
    %42 = vector.load %arg13[%41, %c0_18] : memref<64x32xf32, #tpu.memory_space<vmem>>, vector<8x32xf32>
    tpu.vector_store %arg13[%41, %c0_18], %37 {strides = array<i32>} : memref<64x32xf32, #tpu.memory_space<vmem>>, vector<8x32xf32>,
    %c1_i32 = arith.constant 1 : i32
    %c8_i32_19 = arith.constant 8 : i32
    %43 = arith.muli %c1_i32, %c8_i32_19 : i32
    %44 = tpu.assume_multiple %43, 8 : i32
    %45 = arith.index_cast %44 : i32 to index
    %c0_20 = arith.constant 0 : index
    %46 = vector.load %arg12[%45, %c0_20] : memref<64x128xf32, #tpu.memory_space<vmem>>, vector<8x128xf32>
    %cst_21 = arith.constant dense<0.000000e+00> : vector<8x128xf32>
    %47 = tpu.matmul %37, %0, %cst_21 {dimension_numbers = #tpu.dot_dimension_numbers<[1], [0], [0], [1], [0, 0, 1, 1], [], []>} : vector<8x32xf32>, vector<32x128xf32>, vector<8x128xf32> -> vector<8x128xf32>
    %48 = arith.addf %47, %3 : vector<8x128xf32>
    %49 = vector.extract_strided_slice %46 {offsets = [0, 0], sizes = [8, 64], strides = [1, 1]} : vector<8x128xf32> to vector<8x64xf32>
    %50 = vector.extract_strided_slice %48 {offsets = [0, 0], sizes = [8, 64], strides = [1, 1]} : vector<8x128xf32> to vector<8x64xf32>
    %51 = arith.addf %49, %50 : vector<8x64xf32>
    %52 = arith.negf %51 : vector<8x64xf32>
    %53 = math.exp %52 : vector<8x64xf32>
    %cst_22 = arith.constant 1.000000e+00 : f32
    %54 = vector.broadcast %cst_22 : f32 to vector<8x64xf32>
    %55 = arith.addf %54, %53 : vector<8x64xf32>
    %56 = arith.divf %54, %55 : vector<8x64xf32>
    %57 = vector.extract_strided_slice %56 {offsets = [0, 0], sizes = [8, 32], strides = [1, 1]} : vector<8x64xf32> to vector<8x32xf32>
    %58 = vector.extract_strided_slice %56 {offsets = [0, 32], sizes = [8, 32], strides = [1, 1]} : vector<8x64xf32> to vector<8x32xf32>
    %59 = vector.extract_strided_slice %46 {offsets = [0, 64], sizes = [8, 32], strides = [1, 1]} : vector<8x128xf32> to vector<8x32xf32>
    %60 = vector.extract_strided_slice %48 {offsets = [0, 64], sizes = [8, 32], strides = [1, 1]} : vector<8x128xf32> to vector<8x32xf32>
    %61 = arith.mulf %57, %60 : vector<8x32xf32>
    %62 = arith.addf %59, %61 : vector<8x32xf32>
    %63 = math.tanh %62 : vector<8x32xf32>
    %cst_23 = arith.constant 1.000000e+00 : f32
    %64 = vector.broadcast %cst_23 : f32 to vector<8x32xf32>
    %65 = arith.subf %64, %58 : vector<8x32xf32>
    %66 = arith.mulf %65, %63 : vector<8x32xf32>
    %67 = arith.mulf %58, %37 : vector<8x32xf32>
    %68 = arith.addf %66, %67 : vector<8x32xf32>
    %c8_i32_24 = arith.constant 8 : i32
    %69 = arith.muli %c1_i32, %c8_i32_24 : i32
    %c0_i32_25 = arith.constant 0 : i32
    %70 = arith.addi %c0_i32_25, %69 : i32
    %71 = tpu.assume_multiple %70, 8 : i32
    %72 = arith.index_cast %71 : i32 to index
    %c0_26 = arith.constant 0 : index
    %73 = vector.load %arg13[%72, %c0_26] : memref<64x32xf32, #tpu.memory_space<vmem>>, vector<8x32xf32>
    tpu.vector_store %arg13[%72, %c0_26], %68 {strides = array<i32>} : memref<64x32xf32, #tpu.memory_space<vmem>>, vector<8x32xf32>,
    %c2_i32 = arith.constant 2 : i32
    %c8_i32_27 = arith.constant 8 : i32
    %74 = arith.muli %c2_i32, %c8_i32_27 : i32
    %75 = tpu.assume_multiple %74, 8 : i32
    %76 = arith.index_cast %75 : i32 to index
    %c0_28 = arith.constant 0 : index
    %77 = vector.load %arg12[%76, %c0_28] : memref<64x128xf32, #tpu.memory_space<vmem>>, vector<8x128xf32>
    %cst_29 = arith.constant dense<0.000000e+00> : vector<8x128xf32>
    %78 = tpu.matmul %68, %0, %cst_29 {dimension_numbers = #tpu.dot_dimension_numbers<[1], [0], [0], [1], [0, 0, 1, 1], [], []>} : vector<8x32xf32>, vector<32x128xf32>, vector<8x128xf32> -> vector<8x128xf32>
    %79 = arith.addf %78, %3 : vector<8x128xf32>
    %80 = vector.extract_strided_slice %77 {offsets = [0, 0], sizes = [8, 64], strides = [1, 1]} : vector<8x128xf32> to vector<8x64xf32>
    %81 = vector.extract_strided_slice %79 {offsets = [0, 0], sizes = [8, 64], strides = [1, 1]} : vector<8x128xf32> to vector<8x64xf32>
    %82 = arith.addf %80, %81 : vector<8x64xf32>
    %83 = arith.negf %82 : vector<8x64xf32>
    %84 = math.exp %83 : vector<8x64xf32>
    %cst_30 = arith.constant 1.000000e+00 : f32
    %85 = vector.broadcast %cst_30 : f32 to vector<8x64xf32>
    %86 = arith.addf %85, %84 : vector<8x64xf32>
    %87 = arith.divf %85, %86 : vector<8x64xf32>
    %88 = vector.extract_strided_slice %87 {offsets = [0, 0], sizes = [8, 32], strides = [1, 1]} : vector<8x64xf32> to vector<8x32xf32>
    %89 = vector.extract_strided_slice %87 {offsets = [0, 32], sizes = [8, 32], strides = [1, 1]} : vector<8x64xf32> to vector<8x32xf32>
    %90 = vector.extract_strided_slice %77 {offsets = [0, 64], sizes = [8, 32], strides = [1, 1]} : vector<8x128xf32> to vector<8x32xf32>
    %91 = vector.extract_strided_slice %79 {offsets = [0, 64], sizes = [8, 32], strides = [1, 1]} : vector<8x128xf32> to vector<8x32xf32>
    %92 = arith.mulf %88, %91 : vector<8x32xf32>
    %93 = arith.addf %90, %92 : vector<8x32xf32>
    %94 = math.tanh %93 : vector<8x32xf32>
    %cst_31 = arith.constant 1.000000e+00 : f32
    %95 = vector.broadcast %cst_31 : f32 to vector<8x32xf32>
    %96 = arith.subf %95, %89 : vector<8x32xf32>
    %97 = arith.mulf %96, %94 : vector<8x32xf32>
    %98 = arith.mulf %89, %68 : vector<8x32xf32>
    %99 = arith.addf %97, %98 : vector<8x32xf32>
    %c8_i32_32 = arith.constant 8 : i32
    %100 = arith.muli %c2_i32, %c8_i32_32 : i32
    %c0_i32_33 = arith.constant 0 : i32
    %101 = arith.addi %c0_i32_33, %100 : i32
    %102 = tpu.assume_multiple %101, 8 : i32
    %103 = arith.index_cast %102 : i32 to index
    %c0_34 = arith.constant 0 : index
    %104 = vector.load %arg13[%103, %c0_34] : memref<64x32xf32, #tpu.memory_space<vmem>>, vector<8x32xf32>
    tpu.vector_store %arg13[%103, %c0_34], %99 {strides = array<i32>} : memref<64x32xf32, #tpu.memory_space<vmem>>, vector<8x32xf32>,
    %c3_i32 = arith.constant 3 : i32
    %c8_i32_35 = arith.constant 8 : i32
    %105 = arith.muli %c3_i32, %c8_i32_35 : i32
    %106 = tpu.assume_multiple %105, 8 : i32
    %107 = arith.index_cast %106 : i32 to index
    %c0_36 = arith.constant 0 : index
    %108 = vector.load %arg12[%107, %c0_36] : memref<64x128xf32, #tpu.memory_space<vmem>>, vector<8x128xf32>
    %cst_37 = arith.constant dense<0.000000e+00> : vector<8x128xf32>
    %109 = tpu.matmul %99, %0, %cst_37 {dimension_numbers = #tpu.dot_dimension_numbers<[1], [0], [0], [1], [0, 0, 1, 1], [], []>} : vector<8x32xf32>, vector<32x128xf32>, vector<8x128xf32> -> vector<8x128xf32>
    %110 = arith.addf %109, %3 : vector<8x128xf32>
    %111 = vector.extract_strided_slice %108 {offsets = [0, 0], sizes = [8, 64], strides = [1, 1]} : vector<8x128xf32> to vector<8x64xf32>
    %112 = vector.extract_strided_slice %110 {offsets = [0, 0], sizes = [8, 64], strides = [1, 1]} : vector<8x128xf32> to vector<8x64xf32>
    %113 = arith.addf %111, %112 : vector<8x64xf32>
    %114 = arith.negf %113 : vector<8x64xf32>
    %115 = math.exp %114 : vector<8x64xf32>
    %cst_38 = arith.constant 1.000000e+00 : f32
    %116 = vector.broadcast %cst_38 : f32 to vector<8x64xf32>
    %117 = arith.addf %116, %115 : vector<8x64xf32>
    %118 = arith.divf %116, %117 : vector<8x64xf32>
    %119 = vector.extract_strided_slice %118 {offsets = [0, 0], sizes = [8, 32], strides = [1, 1]} : vector<8x64xf32> to vector<8x32xf32>
    %120 = vector.extract_strided_slice %118 {offsets = [0, 32], sizes = [8, 32], strides = [1, 1]} : vector<8x64xf32> to vector<8x32xf32>
    %121 = vector.extract_strided_slice %108 {offsets = [0, 64], sizes = [8, 32], strides = [1, 1]} : vector<8x128xf32> to vector<8x32xf32>
    %122 = vector.extract_strided_slice %110 {offsets = [0, 64], sizes = [8, 32], strides = [1, 1]} : vector<8x128xf32> to vector<8x32xf32>
    %123 = arith.mulf %119, %122 : vector<8x32xf32>
    %124 = arith.addf %121, %123 : vector<8x32xf32>
    %125 = math.tanh %124 : vector<8x32xf32>
    %cst_39 = arith.constant 1.000000e+00 : f32
    %126 = vector.broadcast %cst_39 : f32 to vector<8x32xf32>
    %127 = arith.subf %126, %120 : vector<8x32xf32>
    %128 = arith.mulf %127, %125 : vector<8x32xf32>
    %129 = arith.mulf %120, %99 : vector<8x32xf32>
    %130 = arith.addf %128, %129 : vector<8x32xf32>
    %c8_i32_40 = arith.constant 8 : i32
    %131 = arith.muli %c3_i32, %c8_i32_40 : i32
    %c0_i32_41 = arith.constant 0 : i32
    %132 = arith.addi %c0_i32_41, %131 : i32
    %133 = tpu.assume_multiple %132, 8 : i32
    %134 = arith.index_cast %133 : i32 to index
    %c0_42 = arith.constant 0 : index
    %135 = vector.load %arg13[%134, %c0_42] : memref<64x32xf32, #tpu.memory_space<vmem>>, vector<8x32xf32>
    tpu.vector_store %arg13[%134, %c0_42], %130 {strides = array<i32>} : memref<64x32xf32, #tpu.memory_space<vmem>>, vector<8x32xf32>,
    %c4_i32 = arith.constant 4 : i32
    %c8_i32_43 = arith.constant 8 : i32
    %136 = arith.muli %c4_i32, %c8_i32_43 : i32
    %137 = tpu.assume_multiple %136, 8 : i32
    %138 = arith.index_cast %137 : i32 to index
    %c0_44 = arith.constant 0 : index
    %139 = vector.load %arg12[%138, %c0_44] : memref<64x128xf32, #tpu.memory_space<vmem>>, vector<8x128xf32>
    %cst_45 = arith.constant dense<0.000000e+00> : vector<8x128xf32>
    %140 = tpu.matmul %130, %0, %cst_45 {dimension_numbers = #tpu.dot_dimension_numbers<[1], [0], [0], [1], [0, 0, 1, 1], [], []>} : vector<8x32xf32>, vector<32x128xf32>, vector<8x128xf32> -> vector<8x128xf32>
    %141 = arith.addf %140, %3 : vector<8x128xf32>
    %142 = vector.extract_strided_slice %139 {offsets = [0, 0], sizes = [8, 64], strides = [1, 1]} : vector<8x128xf32> to vector<8x64xf32>
    %143 = vector.extract_strided_slice %141 {offsets = [0, 0], sizes = [8, 64], strides = [1, 1]} : vector<8x128xf32> to vector<8x64xf32>
    %144 = arith.addf %142, %143 : vector<8x64xf32>
    %145 = arith.negf %144 : vector<8x64xf32>
    %146 = math.exp %145 : vector<8x64xf32>
    %cst_46 = arith.constant 1.000000e+00 : f32
    %147 = vector.broadcast %cst_46 : f32 to vector<8x64xf32>
    %148 = arith.addf %147, %146 : vector<8x64xf32>
    %149 = arith.divf %147, %148 : vector<8x64xf32>
    %150 = vector.extract_strided_slice %149 {offsets = [0, 0], sizes = [8, 32], strides = [1, 1]} : vector<8x64xf32> to vector<8x32xf32>
    %151 = vector.extract_strided_slice %149 {offsets = [0, 32], sizes = [8, 32], strides = [1, 1]} : vector<8x64xf32> to vector<8x32xf32>
    %152 = vector.extract_strided_slice %139 {offsets = [0, 64], sizes = [8, 32], strides = [1, 1]} : vector<8x128xf32> to vector<8x32xf32>
    %153 = vector.extract_strided_slice %141 {offsets = [0, 64], sizes = [8, 32], strides = [1, 1]} : vector<8x128xf32> to vector<8x32xf32>
    %154 = arith.mulf %150, %153 : vector<8x32xf32>
    %155 = arith.addf %152, %154 : vector<8x32xf32>
    %156 = math.tanh %155 : vector<8x32xf32>
    %cst_47 = arith.constant 1.000000e+00 : f32
    %157 = vector.broadcast %cst_47 : f32 to vector<8x32xf32>
    %158 = arith.subf %157, %151 : vector<8x32xf32>
    %159 = arith.mulf %158, %156 : vector<8x32xf32>
    %160 = arith.mulf %151, %130 : vector<8x32xf32>
    %161 = arith.addf %159, %160 : vector<8x32xf32>
    %c8_i32_48 = arith.constant 8 : i32
    %162 = arith.muli %c4_i32, %c8_i32_48 : i32
    %c0_i32_49 = arith.constant 0 : i32
    %163 = arith.addi %c0_i32_49, %162 : i32
    %164 = tpu.assume_multiple %163, 8 : i32
    %165 = arith.index_cast %164 : i32 to index
    %c0_50 = arith.constant 0 : index
    %166 = vector.load %arg13[%165, %c0_50] : memref<64x32xf32, #tpu.memory_space<vmem>>, vector<8x32xf32>
    tpu.vector_store %arg13[%165, %c0_50], %161 {strides = array<i32>} : memref<64x32xf32, #tpu.memory_space<vmem>>, vector<8x32xf32>,
    %c5_i32 = arith.constant 5 : i32
    %c8_i32_51 = arith.constant 8 : i32
    %167 = arith.muli %c5_i32, %c8_i32_51 : i32
    %168 = tpu.assume_multiple %167, 8 : i32
    %169 = arith.index_cast %168 : i32 to index
    %c0_52 = arith.constant 0 : index
    %170 = vector.load %arg12[%169, %c0_52] : memref<64x128xf32, #tpu.memory_space<vmem>>, vector<8x128xf32>
    %cst_53 = arith.constant dense<0.000000e+00> : vector<8x128xf32>
    %171 = tpu.matmul %161, %0, %cst_53 {dimension_numbers = #tpu.dot_dimension_numbers<[1], [0], [0], [1], [0, 0, 1, 1], [], []>} : vector<8x32xf32>, vector<32x128xf32>, vector<8x128xf32> -> vector<8x128xf32>
    %172 = arith.addf %171, %3 : vector<8x128xf32>
    %173 = vector.extract_strided_slice %170 {offsets = [0, 0], sizes = [8, 64], strides = [1, 1]} : vector<8x128xf32> to vector<8x64xf32>
    %174 = vector.extract_strided_slice %172 {offsets = [0, 0], sizes = [8, 64], strides = [1, 1]} : vector<8x128xf32> to vector<8x64xf32>
    %175 = arith.addf %173, %174 : vector<8x64xf32>
    %176 = arith.negf %175 : vector<8x64xf32>
    %177 = math.exp %176 : vector<8x64xf32>
    %cst_54 = arith.constant 1.000000e+00 : f32
    %178 = vector.broadcast %cst_54 : f32 to vector<8x64xf32>
    %179 = arith.addf %178, %177 : vector<8x64xf32>
    %180 = arith.divf %178, %179 : vector<8x64xf32>
    %181 = vector.extract_strided_slice %180 {offsets = [0, 0], sizes = [8, 32], strides = [1, 1]} : vector<8x64xf32> to vector<8x32xf32>
    %182 = vector.extract_strided_slice %180 {offsets = [0, 32], sizes = [8, 32], strides = [1, 1]} : vector<8x64xf32> to vector<8x32xf32>
    %183 = vector.extract_strided_slice %170 {offsets = [0, 64], sizes = [8, 32], strides = [1, 1]} : vector<8x128xf32> to vector<8x32xf32>
    %184 = vector.extract_strided_slice %172 {offsets = [0, 64], sizes = [8, 32], strides = [1, 1]} : vector<8x128xf32> to vector<8x32xf32>
    %185 = arith.mulf %181, %184 : vector<8x32xf32>
    %186 = arith.addf %183, %185 : vector<8x32xf32>
    %187 = math.tanh %186 : vector<8x32xf32>
    %cst_55 = arith.constant 1.000000e+00 : f32
    %188 = vector.broadcast %cst_55 : f32 to vector<8x32xf32>
    %189 = arith.subf %188, %182 : vector<8x32xf32>
    %190 = arith.mulf %189, %187 : vector<8x32xf32>
    %191 = arith.mulf %182, %161 : vector<8x32xf32>
    %192 = arith.addf %190, %191 : vector<8x32xf32>
    %c8_i32_56 = arith.constant 8 : i32
    %193 = arith.muli %c5_i32, %c8_i32_56 : i32
    %c0_i32_57 = arith.constant 0 : i32
    %194 = arith.addi %c0_i32_57, %193 : i32
    %195 = tpu.assume_multiple %194, 8 : i32
    %196 = arith.index_cast %195 : i32 to index
    %c0_58 = arith.constant 0 : index
    %197 = vector.load %arg13[%196, %c0_58] : memref<64x32xf32, #tpu.memory_space<vmem>>, vector<8x32xf32>
    tpu.vector_store %arg13[%196, %c0_58], %192 {strides = array<i32>} : memref<64x32xf32, #tpu.memory_space<vmem>>, vector<8x32xf32>,
    %c6_i32 = arith.constant 6 : i32
    %c8_i32_59 = arith.constant 8 : i32
    %198 = arith.muli %c6_i32, %c8_i32_59 : i32
    %199 = tpu.assume_multiple %198, 8 : i32
    %200 = arith.index_cast %199 : i32 to index
    %c0_60 = arith.constant 0 : index
    %201 = vector.load %arg12[%200, %c0_60] : memref<64x128xf32, #tpu.memory_space<vmem>>, vector<8x128xf32>
    %cst_61 = arith.constant dense<0.000000e+00> : vector<8x128xf32>
    %202 = tpu.matmul %192, %0, %cst_61 {dimension_numbers = #tpu.dot_dimension_numbers<[1], [0], [0], [1], [0, 0, 1, 1], [], []>} : vector<8x32xf32>, vector<32x128xf32>, vector<8x128xf32> -> vector<8x128xf32>
    %203 = arith.addf %202, %3 : vector<8x128xf32>
    %204 = vector.extract_strided_slice %201 {offsets = [0, 0], sizes = [8, 64], strides = [1, 1]} : vector<8x128xf32> to vector<8x64xf32>
    %205 = vector.extract_strided_slice %203 {offsets = [0, 0], sizes = [8, 64], strides = [1, 1]} : vector<8x128xf32> to vector<8x64xf32>
    %206 = arith.addf %204, %205 : vector<8x64xf32>
    %207 = arith.negf %206 : vector<8x64xf32>
    %208 = math.exp %207 : vector<8x64xf32>
    %cst_62 = arith.constant 1.000000e+00 : f32
    %209 = vector.broadcast %cst_62 : f32 to vector<8x64xf32>
    %210 = arith.addf %209, %208 : vector<8x64xf32>
    %211 = arith.divf %209, %210 : vector<8x64xf32>
    %212 = vector.extract_strided_slice %211 {offsets = [0, 0], sizes = [8, 32], strides = [1, 1]} : vector<8x64xf32> to vector<8x32xf32>
    %213 = vector.extract_strided_slice %211 {offsets = [0, 32], sizes = [8, 32], strides = [1, 1]} : vector<8x64xf32> to vector<8x32xf32>
    %214 = vector.extract_strided_slice %201 {offsets = [0, 64], sizes = [8, 32], strides = [1, 1]} : vector<8x128xf32> to vector<8x32xf32>
    %215 = vector.extract_strided_slice %203 {offsets = [0, 64], sizes = [8, 32], strides = [1, 1]} : vector<8x128xf32> to vector<8x32xf32>
    %216 = arith.mulf %212, %215 : vector<8x32xf32>
    %217 = arith.addf %214, %216 : vector<8x32xf32>
    %218 = math.tanh %217 : vector<8x32xf32>
    %cst_63 = arith.constant 1.000000e+00 : f32
    %219 = vector.broadcast %cst_63 : f32 to vector<8x32xf32>
    %220 = arith.subf %219, %213 : vector<8x32xf32>
    %221 = arith.mulf %220, %218 : vector<8x32xf32>
    %222 = arith.mulf %213, %192 : vector<8x32xf32>
    %223 = arith.addf %221, %222 : vector<8x32xf32>
    %c8_i32_64 = arith.constant 8 : i32
    %224 = arith.muli %c6_i32, %c8_i32_64 : i32
    %c0_i32_65 = arith.constant 0 : i32
    %225 = arith.addi %c0_i32_65, %224 : i32
    %226 = tpu.assume_multiple %225, 8 : i32
    %227 = arith.index_cast %226 : i32 to index
    %c0_66 = arith.constant 0 : index
    %228 = vector.load %arg13[%227, %c0_66] : memref<64x32xf32, #tpu.memory_space<vmem>>, vector<8x32xf32>
    tpu.vector_store %arg13[%227, %c0_66], %223 {strides = array<i32>} : memref<64x32xf32, #tpu.memory_space<vmem>>, vector<8x32xf32>,
    %c7_i32 = arith.constant 7 : i32
    %c8_i32_67 = arith.constant 8 : i32
    %229 = arith.muli %c7_i32, %c8_i32_67 : i32
    %230 = tpu.assume_multiple %229, 8 : i32
    %231 = arith.index_cast %230 : i32 to index
    %c0_68 = arith.constant 0 : index
    %232 = vector.load %arg12[%231, %c0_68] : memref<64x128xf32, #tpu.memory_space<vmem>>, vector<8x128xf32>
    %cst_69 = arith.constant dense<0.000000e+00> : vector<8x128xf32>
    %233 = tpu.matmul %223, %0, %cst_69 {dimension_numbers = #tpu.dot_dimension_numbers<[1], [0], [0], [1], [0, 0, 1, 1], [], []>} : vector<8x32xf32>, vector<32x128xf32>, vector<8x128xf32> -> vector<8x128xf32>
    %234 = arith.addf %233, %3 : vector<8x128xf32>
    %235 = vector.extract_strided_slice %232 {offsets = [0, 0], sizes = [8, 64], strides = [1, 1]} : vector<8x128xf32> to vector<8x64xf32>
    %236 = vector.extract_strided_slice %234 {offsets = [0, 0], sizes = [8, 64], strides = [1, 1]} : vector<8x128xf32> to vector<8x64xf32>
    %237 = arith.addf %235, %236 : vector<8x64xf32>
    %238 = arith.negf %237 : vector<8x64xf32>
    %239 = math.exp %238 : vector<8x64xf32>
    %cst_70 = arith.constant 1.000000e+00 : f32
    %240 = vector.broadcast %cst_70 : f32 to vector<8x64xf32>
    %241 = arith.addf %240, %239 : vector<8x64xf32>
    %242 = arith.divf %240, %241 : vector<8x64xf32>
    %243 = vector.extract_strided_slice %242 {offsets = [0, 0], sizes = [8, 32], strides = [1, 1]} : vector<8x64xf32> to vector<8x32xf32>
    %244 = vector.extract_strided_slice %242 {offsets = [0, 32], sizes = [8, 32], strides = [1, 1]} : vector<8x64xf32> to vector<8x32xf32>
    %245 = vector.extract_strided_slice %232 {offsets = [0, 64], sizes = [8, 32], strides = [1, 1]} : vector<8x128xf32> to vector<8x32xf32>
    %246 = vector.extract_strided_slice %234 {offsets = [0, 64], sizes = [8, 32], strides = [1, 1]} : vector<8x128xf32> to vector<8x32xf32>
    %247 = arith.mulf %243, %246 : vector<8x32xf32>
    %248 = arith.addf %245, %247 : vector<8x32xf32>
    %249 = math.tanh %248 : vector<8x32xf32>
    %cst_71 = arith.constant 1.000000e+00 : f32
    %250 = vector.broadcast %cst_71 : f32 to vector<8x32xf32>
    %251 = arith.subf %250, %244 : vector<8x32xf32>
    %252 = arith.mulf %251, %249 : vector<8x32xf32>
    %253 = arith.mulf %244, %223 : vector<8x32xf32>
    %254 = arith.addf %252, %253 : vector<8x32xf32>
    %c8_i32_72 = arith.constant 8 : i32
    %255 = arith.muli %c7_i32, %c8_i32_72 : i32
    %c0_i32_73 = arith.constant 0 : i32
    %256 = arith.addi %c0_i32_73, %255 : i32
    %257 = tpu.assume_multiple %256, 8 : i32
    %258 = arith.index_cast %257 : i32 to index
    %c0_74 = arith.constant 0 : index
    %259 = vector.load %arg13[%258, %c0_74] : memref<64x32xf32, #tpu.memory_space<vmem>>, vector<8x32xf32>
    tpu.vector_store %arg13[%258, %c0_74], %254 {strides = array<i32>} : memref<64x32xf32, #tpu.memory_space<vmem>>, vector<8x32xf32>,
    %c8_i32_75 = arith.constant 8 : i32
    %c0_76 = arith.constant 0 : index
    %c0_77 = arith.constant 0 : index
    %260 = vector.load %arg6[%c0_76, %c0_77] : memref<32x128xf32, #tpu.memory_space<vmem>>, vector<32x128xf32>
    %c0_78 = arith.constant 0 : index
    %c0_79 = arith.constant 0 : index
    %261 = vector.load %arg8[%c0_78, %c0_79] : memref<1x128xf32, #tpu.memory_space<vmem>>, vector<1x128xf32>
    %262 = vector.shape_cast %261 : vector<1x128xf32> to vector<1x128xf32>
    %263 = vector.broadcast %262 : vector<1x128xf32> to vector<8x128xf32>
    %cst_80 = arith.constant 0.000000e+00 : f32
    %264 = vector.broadcast %cst_80 : f32 to vector<8x32xf32>
    %c0_81 = arith.constant 0 : index
    %c0_82 = arith.constant 0 : index
    %265 = vector.load %arg13[%c0_81, %c0_82] : memref<64x32xf32, #tpu.memory_space<vmem>>, vector<64x32xf32>
    %c0_83 = arith.constant 0 : index
    %c0_84 = arith.constant 0 : index
    %266 = vector.load %arg5[%c0_83, %c0_84] : memref<32x128xf32, #tpu.memory_space<vmem>>, vector<32x128xf32>
    %cst_85 = arith.constant dense<0.000000e+00> : vector<64x128xf32>
    %267 = tpu.matmul %265, %266, %cst_85 {dimension_numbers = #tpu.dot_dimension_numbers<[1], [0], [0], [1], [0, 0, 1, 1], [], []>} : vector<64x32xf32>, vector<32x128xf32>, vector<64x128xf32> -> vector<64x128xf32>
    %c0_86 = arith.constant 0 : index
    %c0_87 = arith.constant 0 : index
    %268 = vector.load %arg7[%c0_86, %c0_87] : memref<1x128xf32, #tpu.memory_space<vmem>>, vector<1x128xf32>
    %269 = vector.broadcast %268 : vector<1x128xf32> to vector<64x128xf32>
    %270 = arith.addf %267, %269 : vector<64x128xf32>
    %c0_88 = arith.constant 0 : index
    %c0_89 = arith.constant 0 : index
    %271 = vector.load %arg12[%c0_88, %c0_89] : memref<64x128xf32, #tpu.memory_space<vmem>>, vector<64x128xf32>
    tpu.vector_store %arg12[%c0_88, %c0_89], %270 {strides = array<i32>} : memref<64x128xf32, #tpu.memory_space<vmem>>, vector<64x128xf32>,
    %c0_i32_90 = arith.constant 0 : i32
    %c8_i32_91 = arith.constant 8 : i32
    %272 = arith.muli %c0_i32_90, %c8_i32_91 : i32
    %273 = tpu.assume_multiple %272, 8 : i32
    %274 = arith.index_cast %273 : i32 to index
    %c0_92 = arith.constant 0 : index
    %275 = vector.load %arg12[%274, %c0_92] : memref<64x128xf32, #tpu.memory_space<vmem>>, vector<8x128xf32>
    %cst_93 = arith.constant dense<0.000000e+00> : vector<8x128xf32>
    %276 = tpu.matmul %264, %260, %cst_93 {dimension_numbers = #tpu.dot_dimension_numbers<[1], [0], [0], [1], [0, 0, 1, 1], [], []>} : vector<8x32xf32>, vector<32x128xf32>, vector<8x128xf32> -> vector<8x128xf32>
    %277 = arith.addf %276, %263 : vector<8x128xf32>
    %278 = vector.extract_strided_slice %275 {offsets = [0, 0], sizes = [8, 64], strides = [1, 1]} : vector<8x128xf32> to vector<8x64xf32>
    %279 = vector.extract_strided_slice %277 {offsets = [0, 0], sizes = [8, 64], strides = [1, 1]} : vector<8x128xf32> to vector<8x64xf32>
    %280 = arith.addf %278, %279 : vector<8x64xf32>
    %281 = arith.negf %280 : vector<8x64xf32>
    %282 = math.exp %281 : vector<8x64xf32>
    %cst_94 = arith.constant 1.000000e+00 : f32
    %283 = vector.broadcast %cst_94 : f32 to vector<8x64xf32>
    %284 = arith.addf %283, %282 : vector<8x64xf32>
    %285 = arith.divf %283, %284 : vector<8x64xf32>
    %286 = vector.extract_strided_slice %285 {offsets = [0, 0], sizes = [8, 32], strides = [1, 1]} : vector<8x64xf32> to vector<8x32xf32>
    %287 = vector.extract_strided_slice %285 {offsets = [0, 32], sizes = [8, 32], strides = [1, 1]} : vector<8x64xf32> to vector<8x32xf32>
    %288 = vector.extract_strided_slice %275 {offsets = [0, 64], sizes = [8, 32], strides = [1, 1]} : vector<8x128xf32> to vector<8x32xf32>
    %289 = vector.extract_strided_slice %277 {offsets = [0, 64], sizes = [8, 32], strides = [1, 1]} : vector<8x128xf32> to vector<8x32xf32>
    %290 = arith.mulf %286, %289 : vector<8x32xf32>
    %291 = arith.addf %288, %290 : vector<8x32xf32>
    %292 = math.tanh %291 : vector<8x32xf32>
    %cst_95 = arith.constant 1.000000e+00 : f32
    %293 = vector.broadcast %cst_95 : f32 to vector<8x32xf32>
    %294 = arith.subf %293, %287 : vector<8x32xf32>
    %295 = arith.mulf %294, %292 : vector<8x32xf32>
    %296 = arith.mulf %287, %264 : vector<8x32xf32>
    %297 = arith.addf %295, %296 : vector<8x32xf32>
    %c1_i32_96 = arith.constant 1 : i32
    %c8_i32_97 = arith.constant 8 : i32
    %298 = arith.muli %c1_i32_96, %c8_i32_97 : i32
    %299 = tpu.assume_multiple %298, 8 : i32
    %300 = arith.index_cast %299 : i32 to index
    %c0_98 = arith.constant 0 : index
    %301 = vector.load %arg12[%300, %c0_98] : memref<64x128xf32, #tpu.memory_space<vmem>>, vector<8x128xf32>
    %cst_99 = arith.constant dense<0.000000e+00> : vector<8x128xf32>
    %302 = tpu.matmul %297, %260, %cst_99 {dimension_numbers = #tpu.dot_dimension_numbers<[1], [0], [0], [1], [0, 0, 1, 1], [], []>} : vector<8x32xf32>, vector<32x128xf32>, vector<8x128xf32> -> vector<8x128xf32>
    %303 = arith.addf %302, %263 : vector<8x128xf32>
    %304 = vector.extract_strided_slice %301 {offsets = [0, 0], sizes = [8, 64], strides = [1, 1]} : vector<8x128xf32> to vector<8x64xf32>
    %305 = vector.extract_strided_slice %303 {offsets = [0, 0], sizes = [8, 64], strides = [1, 1]} : vector<8x128xf32> to vector<8x64xf32>
    %306 = arith.addf %304, %305 : vector<8x64xf32>
    %307 = arith.negf %306 : vector<8x64xf32>
    %308 = math.exp %307 : vector<8x64xf32>
    %cst_100 = arith.constant 1.000000e+00 : f32
    %309 = vector.broadcast %cst_100 : f32 to vector<8x64xf32>
    %310 = arith.addf %309, %308 : vector<8x64xf32>
    %311 = arith.divf %309, %310 : vector<8x64xf32>
    %312 = vector.extract_strided_slice %311 {offsets = [0, 0], sizes = [8, 32], strides = [1, 1]} : vector<8x64xf32> to vector<8x32xf32>
    %313 = vector.extract_strided_slice %311 {offsets = [0, 32], sizes = [8, 32], strides = [1, 1]} : vector<8x64xf32> to vector<8x32xf32>
    %314 = vector.extract_strided_slice %301 {offsets = [0, 64], sizes = [8, 32], strides = [1, 1]} : vector<8x128xf32> to vector<8x32xf32>
    %315 = vector.extract_strided_slice %303 {offsets = [0, 64], sizes = [8, 32], strides = [1, 1]} : vector<8x128xf32> to vector<8x32xf32>
    %316 = arith.mulf %312, %315 : vector<8x32xf32>
    %317 = arith.addf %314, %316 : vector<8x32xf32>
    %318 = math.tanh %317 : vector<8x32xf32>
    %cst_101 = arith.constant 1.000000e+00 : f32
    %319 = vector.broadcast %cst_101 : f32 to vector<8x32xf32>
    %320 = arith.subf %319, %313 : vector<8x32xf32>
    %321 = arith.mulf %320, %318 : vector<8x32xf32>
    %322 = arith.mulf %313, %297 : vector<8x32xf32>
    %323 = arith.addf %321, %322 : vector<8x32xf32>
    %c2_i32_102 = arith.constant 2 : i32
    %c8_i32_103 = arith.constant 8 : i32
    %324 = arith.muli %c2_i32_102, %c8_i32_103 : i32
    %325 = tpu.assume_multiple %324, 8 : i32
    %326 = arith.index_cast %325 : i32 to index
    %c0_104 = arith.constant 0 : index
    %327 = vector.load %arg12[%326, %c0_104] : memref<64x128xf32, #tpu.memory_space<vmem>>, vector<8x128xf32>
    %cst_105 = arith.constant dense<0.000000e+00> : vector<8x128xf32>
    %328 = tpu.matmul %323, %260, %cst_105 {dimension_numbers = #tpu.dot_dimension_numbers<[1], [0], [0], [1], [0, 0, 1, 1], [], []>} : vector<8x32xf32>, vector<32x128xf32>, vector<8x128xf32> -> vector<8x128xf32>
    %329 = arith.addf %328, %263 : vector<8x128xf32>
    %330 = vector.extract_strided_slice %327 {offsets = [0, 0], sizes = [8, 64], strides = [1, 1]} : vector<8x128xf32> to vector<8x64xf32>
    %331 = vector.extract_strided_slice %329 {offsets = [0, 0], sizes = [8, 64], strides = [1, 1]} : vector<8x128xf32> to vector<8x64xf32>
    %332 = arith.addf %330, %331 : vector<8x64xf32>
    %333 = arith.negf %332 : vector<8x64xf32>
    %334 = math.exp %333 : vector<8x64xf32>
    %cst_106 = arith.constant 1.000000e+00 : f32
    %335 = vector.broadcast %cst_106 : f32 to vector<8x64xf32>
    %336 = arith.addf %335, %334 : vector<8x64xf32>
    %337 = arith.divf %335, %336 : vector<8x64xf32>
    %338 = vector.extract_strided_slice %337 {offsets = [0, 0], sizes = [8, 32], strides = [1, 1]} : vector<8x64xf32> to vector<8x32xf32>
    %339 = vector.extract_strided_slice %337 {offsets = [0, 32], sizes = [8, 32], strides = [1, 1]} : vector<8x64xf32> to vector<8x32xf32>
    %340 = vector.extract_strided_slice %327 {offsets = [0, 64], sizes = [8, 32], strides = [1, 1]} : vector<8x128xf32> to vector<8x32xf32>
    %341 = vector.extract_strided_slice %329 {offsets = [0, 64], sizes = [8, 32], strides = [1, 1]} : vector<8x128xf32> to vector<8x32xf32>
    %342 = arith.mulf %338, %341 : vector<8x32xf32>
    %343 = arith.addf %340, %342 : vector<8x32xf32>
    %344 = math.tanh %343 : vector<8x32xf32>
    %cst_107 = arith.constant 1.000000e+00 : f32
    %345 = vector.broadcast %cst_107 : f32 to vector<8x32xf32>
    %346 = arith.subf %345, %339 : vector<8x32xf32>
    %347 = arith.mulf %346, %344 : vector<8x32xf32>
    %348 = arith.mulf %339, %323 : vector<8x32xf32>
    %349 = arith.addf %347, %348 : vector<8x32xf32>
    %c3_i32_108 = arith.constant 3 : i32
    %c8_i32_109 = arith.constant 8 : i32
    %350 = arith.muli %c3_i32_108, %c8_i32_109 : i32
    %351 = tpu.assume_multiple %350, 8 : i32
    %352 = arith.index_cast %351 : i32 to index
    %c0_110 = arith.constant 0 : index
    %353 = vector.load %arg12[%352, %c0_110] : memref<64x128xf32, #tpu.memory_space<vmem>>, vector<8x128xf32>
    %cst_111 = arith.constant dense<0.000000e+00> : vector<8x128xf32>
    %354 = tpu.matmul %349, %260, %cst_111 {dimension_numbers = #tpu.dot_dimension_numbers<[1], [0], [0], [1], [0, 0, 1, 1], [], []>} : vector<8x32xf32>, vector<32x128xf32>, vector<8x128xf32> -> vector<8x128xf32>
    %355 = arith.addf %354, %263 : vector<8x128xf32>
    %356 = vector.extract_strided_slice %353 {offsets = [0, 0], sizes = [8, 64], strides = [1, 1]} : vector<8x128xf32> to vector<8x64xf32>
    %357 = vector.extract_strided_slice %355 {offsets = [0, 0], sizes = [8, 64], strides = [1, 1]} : vector<8x128xf32> to vector<8x64xf32>
    %358 = arith.addf %356, %357 : vector<8x64xf32>
    %359 = arith.negf %358 : vector<8x64xf32>
    %360 = math.exp %359 : vector<8x64xf32>
    %cst_112 = arith.constant 1.000000e+00 : f32
    %361 = vector.broadcast %cst_112 : f32 to vector<8x64xf32>
    %362 = arith.addf %361, %360 : vector<8x64xf32>
    %363 = arith.divf %361, %362 : vector<8x64xf32>
    %364 = vector.extract_strided_slice %363 {offsets = [0, 0], sizes = [8, 32], strides = [1, 1]} : vector<8x64xf32> to vector<8x32xf32>
    %365 = vector.extract_strided_slice %363 {offsets = [0, 32], sizes = [8, 32], strides = [1, 1]} : vector<8x64xf32> to vector<8x32xf32>
    %366 = vector.extract_strided_slice %353 {offsets = [0, 64], sizes = [8, 32], strides = [1, 1]} : vector<8x128xf32> to vector<8x32xf32>
    %367 = vector.extract_strided_slice %355 {offsets = [0, 64], sizes = [8, 32], strides = [1, 1]} : vector<8x128xf32> to vector<8x32xf32>
    %368 = arith.mulf %364, %367 : vector<8x32xf32>
    %369 = arith.addf %366, %368 : vector<8x32xf32>
    %370 = math.tanh %369 : vector<8x32xf32>
    %cst_113 = arith.constant 1.000000e+00 : f32
    %371 = vector.broadcast %cst_113 : f32 to vector<8x32xf32>
    %372 = arith.subf %371, %365 : vector<8x32xf32>
    %373 = arith.mulf %372, %370 : vector<8x32xf32>
    %374 = arith.mulf %365, %349 : vector<8x32xf32>
    %375 = arith.addf %373, %374 : vector<8x32xf32>
    %c4_i32_114 = arith.constant 4 : i32
    %c8_i32_115 = arith.constant 8 : i32
    %376 = arith.muli %c4_i32_114, %c8_i32_115 : i32
    %377 = tpu.assume_multiple %376, 8 : i32
    %378 = arith.index_cast %377 : i32 to index
    %c0_116 = arith.constant 0 : index
    %379 = vector.load %arg12[%378, %c0_116] : memref<64x128xf32, #tpu.memory_space<vmem>>, vector<8x128xf32>
    %cst_117 = arith.constant dense<0.000000e+00> : vector<8x128xf32>
    %380 = tpu.matmul %375, %260, %cst_117 {dimension_numbers = #tpu.dot_dimension_numbers<[1], [0], [0], [1], [0, 0, 1, 1], [], []>} : vector<8x32xf32>, vector<32x128xf32>, vector<8x128xf32> -> vector<8x128xf32>
    %381 = arith.addf %380, %263 : vector<8x128xf32>
    %382 = vector.extract_strided_slice %379 {offsets = [0, 0], sizes = [8, 64], strides = [1, 1]} : vector<8x128xf32> to vector<8x64xf32>
    %383 = vector.extract_strided_slice %381 {offsets = [0, 0], sizes = [8, 64], strides = [1, 1]} : vector<8x128xf32> to vector<8x64xf32>
    %384 = arith.addf %382, %383 : vector<8x64xf32>
    %385 = arith.negf %384 : vector<8x64xf32>
    %386 = math.exp %385 : vector<8x64xf32>
    %cst_118 = arith.constant 1.000000e+00 : f32
    %387 = vector.broadcast %cst_118 : f32 to vector<8x64xf32>
    %388 = arith.addf %387, %386 : vector<8x64xf32>
    %389 = arith.divf %387, %388 : vector<8x64xf32>
    %390 = vector.extract_strided_slice %389 {offsets = [0, 0], sizes = [8, 32], strides = [1, 1]} : vector<8x64xf32> to vector<8x32xf32>
    %391 = vector.extract_strided_slice %389 {offsets = [0, 32], sizes = [8, 32], strides = [1, 1]} : vector<8x64xf32> to vector<8x32xf32>
    %392 = vector.extract_strided_slice %379 {offsets = [0, 64], sizes = [8, 32], strides = [1, 1]} : vector<8x128xf32> to vector<8x32xf32>
    %393 = vector.extract_strided_slice %381 {offsets = [0, 64], sizes = [8, 32], strides = [1, 1]} : vector<8x128xf32> to vector<8x32xf32>
    %394 = arith.mulf %390, %393 : vector<8x32xf32>
    %395 = arith.addf %392, %394 : vector<8x32xf32>
    %396 = math.tanh %395 : vector<8x32xf32>
    %cst_119 = arith.constant 1.000000e+00 : f32
    %397 = vector.broadcast %cst_119 : f32 to vector<8x32xf32>
    %398 = arith.subf %397, %391 : vector<8x32xf32>
    %399 = arith.mulf %398, %396 : vector<8x32xf32>
    %400 = arith.mulf %391, %375 : vector<8x32xf32>
    %401 = arith.addf %399, %400 : vector<8x32xf32>
    %c5_i32_120 = arith.constant 5 : i32
    %c8_i32_121 = arith.constant 8 : i32
    %402 = arith.muli %c5_i32_120, %c8_i32_121 : i32
    %403 = tpu.assume_multiple %402, 8 : i32
    %404 = arith.index_cast %403 : i32 to index
    %c0_122 = arith.constant 0 : index
    %405 = vector.load %arg12[%404, %c0_122] : memref<64x128xf32, #tpu.memory_space<vmem>>, vector<8x128xf32>
    %cst_123 = arith.constant dense<0.000000e+00> : vector<8x128xf32>
    %406 = tpu.matmul %401, %260, %cst_123 {dimension_numbers = #tpu.dot_dimension_numbers<[1], [0], [0], [1], [0, 0, 1, 1], [], []>} : vector<8x32xf32>, vector<32x128xf32>, vector<8x128xf32> -> vector<8x128xf32>
    %407 = arith.addf %406, %263 : vector<8x128xf32>
    %408 = vector.extract_strided_slice %405 {offsets = [0, 0], sizes = [8, 64], strides = [1, 1]} : vector<8x128xf32> to vector<8x64xf32>
    %409 = vector.extract_strided_slice %407 {offsets = [0, 0], sizes = [8, 64], strides = [1, 1]} : vector<8x128xf32> to vector<8x64xf32>
    %410 = arith.addf %408, %409 : vector<8x64xf32>
    %411 = arith.negf %410 : vector<8x64xf32>
    %412 = math.exp %411 : vector<8x64xf32>
    %cst_124 = arith.constant 1.000000e+00 : f32
    %413 = vector.broadcast %cst_124 : f32 to vector<8x64xf32>
    %414 = arith.addf %413, %412 : vector<8x64xf32>
    %415 = arith.divf %413, %414 : vector<8x64xf32>
    %416 = vector.extract_strided_slice %415 {offsets = [0, 0], sizes = [8, 32], strides = [1, 1]} : vector<8x64xf32> to vector<8x32xf32>
    %417 = vector.extract_strided_slice %415 {offsets = [0, 32], sizes = [8, 32], strides = [1, 1]} : vector<8x64xf32> to vector<8x32xf32>
    %418 = vector.extract_strided_slice %405 {offsets = [0, 64], sizes = [8, 32], strides = [1, 1]} : vector<8x128xf32> to vector<8x32xf32>
    %419 = vector.extract_strided_slice %407 {offsets = [0, 64], sizes = [8, 32], strides = [1, 1]} : vector<8x128xf32> to vector<8x32xf32>
    %420 = arith.mulf %416, %419 : vector<8x32xf32>
    %421 = arith.addf %418, %420 : vector<8x32xf32>
    %422 = math.tanh %421 : vector<8x32xf32>
    %cst_125 = arith.constant 1.000000e+00 : f32
    %423 = vector.broadcast %cst_125 : f32 to vector<8x32xf32>
    %424 = arith.subf %423, %417 : vector<8x32xf32>
    %425 = arith.mulf %424, %422 : vector<8x32xf32>
    %426 = arith.mulf %417, %401 : vector<8x32xf32>
    %427 = arith.addf %425, %426 : vector<8x32xf32>
    %c6_i32_126 = arith.constant 6 : i32
    %c8_i32_127 = arith.constant 8 : i32
    %428 = arith.muli %c6_i32_126, %c8_i32_127 : i32
    %429 = tpu.assume_multiple %428, 8 : i32
    %430 = arith.index_cast %429 : i32 to index
    %c0_128 = arith.constant 0 : index
    %431 = vector.load %arg12[%430, %c0_128] : memref<64x128xf32, #tpu.memory_space<vmem>>, vector<8x128xf32>
    %cst_129 = arith.constant dense<0.000000e+00> : vector<8x128xf32>
    %432 = tpu.matmul %427, %260, %cst_129 {dimension_numbers = #tpu.dot_dimension_numbers<[1], [0], [0], [1], [0, 0, 1, 1], [], []>} : vector<8x32xf32>, vector<32x128xf32>, vector<8x128xf32> -> vector<8x128xf32>
    %433 = arith.addf %432, %263 : vector<8x128xf32>
    %434 = vector.extract_strided_slice %431 {offsets = [0, 0], sizes = [8, 64], strides = [1, 1]} : vector<8x128xf32> to vector<8x64xf32>
    %435 = vector.extract_strided_slice %433 {offsets = [0, 0], sizes = [8, 64], strides = [1, 1]} : vector<8x128xf32> to vector<8x64xf32>
    %436 = arith.addf %434, %435 : vector<8x64xf32>
    %437 = arith.negf %436 : vector<8x64xf32>
    %438 = math.exp %437 : vector<8x64xf32>
    %cst_130 = arith.constant 1.000000e+00 : f32
    %439 = vector.broadcast %cst_130 : f32 to vector<8x64xf32>
    %440 = arith.addf %439, %438 : vector<8x64xf32>
    %441 = arith.divf %439, %440 : vector<8x64xf32>
    %442 = vector.extract_strided_slice %441 {offsets = [0, 0], sizes = [8, 32], strides = [1, 1]} : vector<8x64xf32> to vector<8x32xf32>
    %443 = vector.extract_strided_slice %441 {offsets = [0, 32], sizes = [8, 32], strides = [1, 1]} : vector<8x64xf32> to vector<8x32xf32>
    %444 = vector.extract_strided_slice %431 {offsets = [0, 64], sizes = [8, 32], strides = [1, 1]} : vector<8x128xf32> to vector<8x32xf32>
    %445 = vector.extract_strided_slice %433 {offsets = [0, 64], sizes = [8, 32], strides = [1, 1]} : vector<8x128xf32> to vector<8x32xf32>
    %446 = arith.mulf %442, %445 : vector<8x32xf32>
    %447 = arith.addf %444, %446 : vector<8x32xf32>
    %448 = math.tanh %447 : vector<8x32xf32>
    %cst_131 = arith.constant 1.000000e+00 : f32
    %449 = vector.broadcast %cst_131 : f32 to vector<8x32xf32>
    %450 = arith.subf %449, %443 : vector<8x32xf32>
    %451 = arith.mulf %450, %448 : vector<8x32xf32>
    %452 = arith.mulf %443, %427 : vector<8x32xf32>
    %453 = arith.addf %451, %452 : vector<8x32xf32>
    %c7_i32_132 = arith.constant 7 : i32
    %c8_i32_133 = arith.constant 8 : i32
    %454 = arith.muli %c7_i32_132, %c8_i32_133 : i32
    %455 = tpu.assume_multiple %454, 8 : i32
    %456 = arith.index_cast %455 : i32 to index
    %c0_134 = arith.constant 0 : index
    %457 = vector.load %arg12[%456, %c0_134] : memref<64x128xf32, #tpu.memory_space<vmem>>, vector<8x128xf32>
    %cst_135 = arith.constant dense<0.000000e+00> : vector<8x128xf32>
    %458 = tpu.matmul %453, %260, %cst_135 {dimension_numbers = #tpu.dot_dimension_numbers<[1], [0], [0], [1], [0, 0, 1, 1], [], []>} : vector<8x32xf32>, vector<32x128xf32>, vector<8x128xf32> -> vector<8x128xf32>
    %459 = arith.addf %458, %263 : vector<8x128xf32>
    %460 = vector.extract_strided_slice %457 {offsets = [0, 0], sizes = [8, 64], strides = [1, 1]} : vector<8x128xf32> to vector<8x64xf32>
    %461 = vector.extract_strided_slice %459 {offsets = [0, 0], sizes = [8, 64], strides = [1, 1]} : vector<8x128xf32> to vector<8x64xf32>
    %462 = arith.addf %460, %461 : vector<8x64xf32>
    %463 = arith.negf %462 : vector<8x64xf32>
    %464 = math.exp %463 : vector<8x64xf32>
    %cst_136 = arith.constant 1.000000e+00 : f32
    %465 = vector.broadcast %cst_136 : f32 to vector<8x64xf32>
    %466 = arith.addf %465, %464 : vector<8x64xf32>
    %467 = arith.divf %465, %466 : vector<8x64xf32>
    %468 = vector.extract_strided_slice %467 {offsets = [0, 0], sizes = [8, 32], strides = [1, 1]} : vector<8x64xf32> to vector<8x32xf32>
    %469 = vector.extract_strided_slice %467 {offsets = [0, 32], sizes = [8, 32], strides = [1, 1]} : vector<8x64xf32> to vector<8x32xf32>
    %470 = vector.extract_strided_slice %457 {offsets = [0, 64], sizes = [8, 32], strides = [1, 1]} : vector<8x128xf32> to vector<8x32xf32>
    %471 = vector.extract_strided_slice %459 {offsets = [0, 64], sizes = [8, 32], strides = [1, 1]} : vector<8x128xf32> to vector<8x32xf32>
    %472 = arith.mulf %468, %471 : vector<8x32xf32>
    %473 = arith.addf %470, %472 : vector<8x32xf32>
    %474 = math.tanh %473 : vector<8x32xf32>
    %cst_137 = arith.constant 1.000000e+00 : f32
    %475 = vector.broadcast %cst_137 : f32 to vector<8x32xf32>
    %476 = arith.subf %475, %469 : vector<8x32xf32>
    %477 = arith.mulf %476, %474 : vector<8x32xf32>
    %478 = arith.mulf %469, %453 : vector<8x32xf32>
    %479 = arith.addf %477, %478 : vector<8x32xf32>
    %c8_i32_138 = arith.constant 8 : i32
    %c0_139 = arith.constant 0 : index
    %c0_140 = arith.constant 0 : index
    %480 = vector.load %arg9[%c0_139, %c0_140] : memref<32x128xf32, #tpu.memory_space<vmem>>, vector<32x128xf32>
    %cst_141 = arith.constant dense<0.000000e+00> : vector<8x128xf32>
    %481 = tpu.matmul %479, %480, %cst_141 {dimension_numbers = #tpu.dot_dimension_numbers<[1], [0], [0], [1], [0, 0, 1, 1], [], []>} : vector<8x32xf32>, vector<32x128xf32>, vector<8x128xf32> -> vector<8x128xf32>
    %c0_142 = arith.constant 0 : index
    %c0_143 = arith.constant 0 : index
    %482 = vector.load %arg10[%c0_142, %c0_143] : memref<1x128xf32, #tpu.memory_space<vmem>>, vector<1x128xf32>
    %483 = vector.broadcast %482 : vector<1x128xf32> to vector<8x128xf32>
    %484 = arith.addf %481, %483 : vector<8x128xf32>
    %c0_144 = arith.constant 0 : index
    %c0_145 = arith.constant 0 : index
    %485 = vector.load %arg11[%c0_144, %c0_145] : memref<8x128xf32, #tpu.memory_space<vmem>>, vector<8x128xf32>
    tpu.vector_store %arg11[%c0_144, %c0_145], %484 {strides = array<i32>} : memref<8x128xf32, #tpu.memory_space<vmem>>, vector<8x128xf32>,
    return
  }
}

</mosaic_0001>

<llo_original>
// kernel: tpu_custom_call.1
$region0: #{tpu_custom_call.1}
  #allocation0 [shape = 'u32[]', space=smem, size = 0x4, offset = 0x4, fixed_abs, tag = 'smem constant byte address 0x4 - core index']
  #allocation1 [shape = 'u32[144,128]{1,0:T(1,128)}', space=vmem, size = 0x12000, scoped, tag = 'internal scratch']
  #allocation2 [shape = 'f32[64,128]{1,0:T(8,128)}', space=vmem, size = 0x8000, scoped, tag = 'scratch operand']
  #allocation3 [shape = 'f32[64,32]{1,0:T(8,128)}', space=vmem, size = 0x8000, scoped, tag = 'scratch operand']
  %s0 = inlined_call_operand.vmem [shape: f32[64,8], index: 0, kind: input, shape index: {}]
  %s1 = inlined_call_operand.vmem [shape: f32[8,128], index: 1, kind: input, shape index: {}]
  %s2 = inlined_call_operand.vmem [shape: f32[32,128], index: 2, kind: input, shape index: {}]
  %s3 = inlined_call_operand.vmem [shape: f32[1,128], index: 3, kind: input, shape index: {}]
  %s4 = inlined_call_operand.vmem [shape: f32[1,128], index: 4, kind: input, shape index: {}]
  %s5 = inlined_call_operand.vmem [shape: f32[32,128], index: 5, kind: input, shape index: {}]
  %s6 = inlined_call_operand.hbm [shape: f32[32,128], index: 6, kind: input, shape index: {}]
  %s7 = inlined_call_operand.vmem [shape: f32[1,128], index: 7, kind: input, shape index: {}]
  %s8 = inlined_call_operand.vmem [shape: f32[1,128], index: 8, kind: input, shape index: {}]
  %s9 = inlined_call_operand.hbm [shape: f32[32,128], index: 9, kind: input, shape index: {}]
  %s10 = inlined_call_operand.vmem [shape: f32[1,128], index: 10, kind: input, shape index: {}]
  %s11 = inlined_call_operand.hbm [shape: f32[8,128], index: 11, kind: output, shape index: {}]
  %s12 = sld [smem:[#allocation0]]
  $region62: #{tpu_custom_call.1} parent=0
    _
  %s14 = ssub.s32 1, %s12
  %s15 = scalar_select 0, %s14, %s12
  $region1: #{tpu_custom_call.1} parent=0
    #allocation4 [shape = 'u8[16384]{0}', space=vmem, size = 0x4000, scoped, tag = 'input window, operand 6, single buffered']
    #allocation5 [shape = 's32[1]{0}', space=sflag, size = 0x4, scoped, tag = 'scoped memory for tpu_custom_call.1']
    #allocation6 [shape = 's32[1]{0}', space=sflag, size = 0x4, scoped, tag = 'scoped memory for tpu_custom_call.1']
    #allocation7 [shape = 'u8[16384]{0}', space=vmem, size = 0x4000, scoped, tag = 'input window, operand 9, single buffered']
    #allocation8 [shape = 's32[1]{0}', space=sflag, size = 0x4, scoped, tag = 'scoped memory for tpu_custom_call.1']
    #allocation9 [shape = 'u8[4096]{0}', space=vmem, size = 0x1000, scoped, tag = 'output window, operand 0, single buffered']
    %16 = vsyncpa [#allocation5], 0
    %17 = vsyncpa [#allocation8], 0
    %18 = vsyncpa [#allocation6], 0
    // Predicated region
    $region2: #{tpu_custom_call.1} parent=1 // pred_check
      _
    $region3: #{tpu_custom_call.1} parent=1 // pred_check_branch
      %20 = sbr.rel (0) target = $region5
    $region4: #{tpu_custom_call.1} parent=1 // pred_region
      _
    $region5: #{tpu_custom_call.1} parent=1 // pred_fallthru
      _
    // Predicated region
    $region6: #{tpu_custom_call.1} parent=1 // pred_check
      _
    $region7: #{tpu_custom_call.1} parent=1 // pred_check_branch
      %22 = sbr.rel (0) target = $region9
    $region8: #{tpu_custom_call.1} parent=1 // pred_region
      _
    $region9: #{tpu_custom_call.1} parent=1 // pred_fallthru
      _
    // Predicated region
    $region10: #{tpu_custom_call.1} parent=1 // pred_check
      _
    $region11: #{tpu_custom_call.1} parent=1 // pred_check_branch
      %24 = sbr.rel (0) target = $region13
    $region12: #{tpu_custom_call.1} parent=1 // pred_region
      _
    $region13: #{tpu_custom_call.1} parent=1 // pred_fallthru
      _
    // Predicated region
    $region14: #{tpu_custom_call.1} parent=1 // pred_check
      _
    $region15: #{tpu_custom_call.1} parent=1 // pred_check_branch
      %26 = sbr.rel (0) target = $region17
    $region16: #{tpu_custom_call.1} parent=1 // pred_region
      _
    $region17: #{tpu_custom_call.1} parent=1 // pred_fallthru
      _
    // Predicated region
    $region18: #{tpu_custom_call.1} parent=1 // pred_check
      _
    $region19: #{tpu_custom_call.1} parent=1 // pred_check_branch
      %28 = sbr.rel (0) target = $region21
    $region20: #{tpu_custom_call.1} parent=1 // pred_region
      _
    $region21: #{tpu_custom_call.1} parent=1 // pred_fallthru
      _
    // Predicated region
    $region22: #{tpu_custom_call.1} parent=1 // pred_check
      _
    $region23: #{tpu_custom_call.1} parent=1 // pred_check_branch
      %30 = sbr.rel (0) target = $region25
    $region24: #{tpu_custom_call.1} parent=1 // pred_region
      _
    $region25: #{tpu_custom_call.1} parent=1 // pred_fallthru
      _
    // Predicated region
    $region26: #{tpu_custom_call.1} parent=1 // pred_check
      _
    $region27: #{tpu_custom_call.1} parent=1 // pred_check_branch
      %32 = sbr.rel (0) target = $region29
    $region28: #{tpu_custom_call.1} parent=1 // pred_region
      %s34 = ssub.s32 512, 512
      %35 = vsyncadd [#allocation5], %s34
      %s36 = sshll.u32 [#allocation4], 4
      %s37 = int_to_ptr.vmem [resolvable:$true] %s36
      %42 = dma.hbm_to_vmem [thread:$0]  %s6, 512, %s37, [#allocation5], 128, 128, 8
    $region29: #{tpu_custom_call.1} parent=1 // pred_fallthru
      _
    // Predicated region
    $region30: #{tpu_custom_call.1} parent=1 // pred_check
      _
    $region31: #{tpu_custom_call.1} parent=1 // pred_check_branch
      %44 = sbr.rel (0) target = $region33
    $region32: #{tpu_custom_call.1} parent=1 // pred_region
      _
    $region33: #{tpu_custom_call.1} parent=1 // pred_fallthru
      _
    // Predicated region
    $region34: #{tpu_custom_call.1} parent=1 // pred_check
      _
    $region35: #{tpu_custom_call.1} parent=1 // pred_check_branch
      %46 = sbr.rel (0) target = $region37
    $region36: #{tpu_custom_call.1} parent=1 // pred_region
      _
    $region37: #{tpu_custom_call.1} parent=1 // pred_fallthru
      _
    // Predicated region
    $region38: #{tpu_custom_call.1} parent=1 // pred_check
      _
    $region39: #{tpu_custom_call.1} parent=1 // pred_check_branch
      %48 = sbr.rel (0) target = $region41
    $region40: #{tpu_custom_call.1} parent=1 // pred_region
      %s50 = ssub.s32 512, 512
      %51 = vsyncadd [#allocation8], %s50
      %s52 = sshll.u32 [#allocation7], 4
      %s53 = int_to_ptr.vmem [resolvable:$true] %s52
      %58 = dma.hbm_to_vmem [thread:$0]  %s9, 512, %s53, [#allocation8], 128, 128, 8
    $region41: #{tpu_custom_call.1} parent=1 // pred_fallthru
      _
    // Predicated region
    $region42: #{tpu_custom_call.1} parent=1 // pred_check
      _
    $region43: #{tpu_custom_call.1} parent=1 // pred_check_branch
      %60 = sbr.rel (0) target = $region45
    $region44: #{tpu_custom_call.1} parent=1 // pred_region
      _
    $region45: #{tpu_custom_call.1} parent=1 // pred_fallthru
      _
    // Predicated region
    $region46: #{tpu_custom_call.1} parent=1 // pred_check
      _
    $region47: #{tpu_custom_call.1} parent=1 // pred_check_branch
      %62 = sbr.rel (0) target = $region49
    $region48: #{tpu_custom_call.1} parent=1 // pred_region
      %63 = dma.done [#allocation5], 512
    $region49: #{tpu_custom_call.1} parent=1 // pred_fallthru
      _
    // Predicated region
    $region50: #{tpu_custom_call.1} parent=1 // pred_check
      _
    $region51: #{tpu_custom_call.1} parent=1 // pred_check_branch
      %65 = sbr.rel (0) target = $region53
    $region52: #{tpu_custom_call.1} parent=1 // pred_region
      %66 = dma.done [#allocation8], 512
    $region53: #{tpu_custom_call.1} parent=1 // pred_fallthru
      _
    %v67 = vld [vmem:[%s2] sm:$0xff]
    %v68 = vld [vmem:[%s2 + $0x8] sm:$0xff]
    %v69 = vld [vmem:[%s2 + $0x10] sm:$0xff]
    %v70 = vld [vmem:[%s2 + $0x18] sm:$0xff]
    %v71 = vld [vmem:[%s4] sm:$0x1]
    %v73 = vlaneseq
    %v74 = vshrl.u32 %v73, 7
    %v75 = vsub.s32 0, %v74
    %v76 = vrot.slane %v71, %v75
    %v78 = vld [vmem:[%s0] sm:$0xff]
    %v79 = vld [vmem:[%s0 + $0x8] sm:$0xff]
    %v80 = vld [vmem:[%s0 + $0x10] sm:$0xff]
    %v81 = vld [vmem:[%s0 + $0x18] sm:$0xff]
    %v82 = vld [vmem:[%s0 + $0x20] sm:$0xff]
    %v83 = vld [vmem:[%s0 + $0x28] sm:$0xff]
    %v84 = vld [vmem:[%s0 + $0x30] sm:$0xff]
    %v85 = vld [vmem:[%s0 + $0x38] sm:$0xff]
    %v86 = vld [vmem:[%s1] sm:$0xff]
    %v87 = vld [vmem:[%s3] sm:$0x1]
    %v89 = vlaneseq
    %v90 = vshrl.u32 %v89, 7
    %v91 = vsub.s32 0, %v90
    %v92 = vrot.slane %v87, %v91
    %vm94 = vcmask 64512
    %v96 = vsel %vm94, %v78, 0
    %v99 = vsel %vm94, %v79, 0
    %v102 = vsel %vm94, %v80, 0
    %v105 = vsel %vm94, %v81, 0
    %v108 = vsel %vm94, %v82, 0
    %v111 = vsel %vm94, %v83, 0
    %v114 = vsel %vm94, %v84, 0
    %v117 = vsel %vm94, %v85, 0
    %119 = vmatprep.subr.mxu0 0.0
    %120 = vmatpush1.msra.mxu0 0.0
    %121 = vmatprep.subr.mxu0 0.0
    %122 = vmatpush1.msra.mxu0 0.0
    %123 = vmatprep.subr.mxu0 0.0
    %124 = vmatpush1.msra.mxu0 0.0
    %125 = vmatprep.subr.mxu0 0.0
    %126 = vmatpush1.msra.mxu0 0.0
    %127 = vmatprep.subr.mxu0 0.0
    %128 = vmatpush1.msra.mxu0 0.0
    %129 = vmatprep.subr.mxu0 0.0
    %130 = vmatpush1.msra.mxu0 0.0
    %131 = vmatprep.subr.mxu0 0.0
    %132 = vmatpush1.msra.mxu0 0.0
    %133 = vmatprep.subr.mxu0 0.0
    %134 = vmatpush1.msra.mxu0 0.0
    %135 = vmatprep.subr.mxu0 0.0
    %136 = vmatpush1.msra.mxu0 0.0
    %137 = vmatprep.subr.mxu0 0.0
    %138 = vmatpush1.msra.mxu0 0.0
    %139 = vmatprep.subr.mxu0 0.0
    %140 = vmatpush1.msra.mxu0 0.0
    %141 = vmatprep.subr.mxu0 0.0
    %142 = vmatpush1.msra.mxu0 0.0
    %143 = vmatprep.subr.mxu0 0.0
    %144 = vmatpush1.msra.mxu0 0.0
    %145 = vmatprep.subr.mxu0 0.0
    %146 = vmatpush1.msra.mxu0 0.0
    %147 = vmatprep.subr.mxu0 0.0
    %148 = vmatpush1.msra.mxu0 0.0
    %149 = vmatprep.subr.mxu0 0.0
    %150 = vmatpush1.msra.mxu0 %v86
    %151 = vmatprep.subr.mxu0 0.0
    %152 = vmatpush2.msra.mxu0 0.0
    %153 = vmatprep.subr.mxu0 0.0
    %154 = vmatpush2.msra.mxu0 0.0
    %155 = vmatprep.subr.mxu0 0.0
    %156 = vmatpush2.msra.mxu0 0.0
    %157 = vmatprep.subr.mxu0 0.0
    %158 = vmatpush2.msra.mxu0 0.0
    %159 = vmatprep.subr.mxu0 0.0
    %160 = vmatpush2.msra.mxu0 0.0
    %161 = vmatprep.subr.mxu0 0.0
    %162 = vmatpush2.msra.mxu0 0.0
    %163 = vmatprep.subr.mxu0 0.0
    %164 = vmatpush2.msra.mxu0 0.0
    %165 = vmatprep.subr.mxu0 0.0
    %166 = vmatpush2.msra.mxu0 0.0
    %167 = vmatprep.subr.mxu0 0.0
    %168 = vmatpush2.msra.mxu0 0.0
    %169 = vmatprep.subr.mxu0 0.0
    %170 = vmatpush2.msra.mxu0 0.0
    %171 = vmatprep.subr.mxu0 0.0
    %172 = vmatpush2.msra.mxu0 0.0
    %173 = vmatprep.subr.mxu0 0.0
    %174 = vmatpush2.msra.mxu0 0.0
    %175 = vmatprep.subr.mxu0 0.0
    %176 = vmatpush2.msra.mxu0 0.0
    %177 = vmatprep.subr.mxu0 0.0
    %178 = vmatpush2.msra.mxu0 0.0
    %179 = vmatprep.subr.mxu0 0.0
    %180 = vmatpush2.msra.mxu0 0.0
    %181 = vmatprep.subr.mxu0 0.0
    %182 = vmatpush2.msra.mxu0 0.0
    %183 = vmatprep.mubr.f32.mxu0 0.0
    %184 = vmatmul.mubr.f32.gmra.mxu0 %v96
    %v185 = vpop.f32.mrf.mxu0
    %v186 = vadd.f32 %v92, %v185
    %v187 = vpop.f32.mrf.mxu0
    %188 = vmatprep.mubr.f32.mxu0 0.0
    %189 = vmatmul.mubr.f32.gmra.mxu0 %v99
    %v190 = vpop.f32.mrf.mxu0
    %v191 = vadd.f32 %v92, %v190
    %v192 = vpop.f32.mrf.mxu0
    %193 = vmatprep.mubr.f32.mxu0 0.0
    %194 = vmatmul.mubr.f32.gmra.mxu0 %v102
    %v195 = vpop.f32.mrf.mxu0
    %v196 = vadd.f32 %v92, %v195
    %v197 = vpop.f32.mrf.mxu0
    %198 = vmatprep.mubr.f32.mxu0 0.0
    %199 = vmatmul.mubr.f32.gmra.mxu0 %v105
    %v200 = vpop.f32.mrf.mxu0
    %v201 = vadd.f32 %v92, %v200
    %v202 = vpop.f32.mrf.mxu0
    %203 = vmatprep.mubr.f32.mxu0 0.0
    %204 = vmatmul.mubr.f32.gmra.mxu0 %v108
    %v205 = vpop.f32.mrf.mxu0
    %v206 = vadd.f32 %v92, %v205
    %v207 = vpop.f32.mrf.mxu0
    %208 = vmatprep.mubr.f32.mxu0 0.0
    %209 = vmatmul.mubr.f32.gmra.mxu0 %v111
    %v210 = vpop.f32.mrf.mxu0
    %v211 = vadd.f32 %v92, %v210
    %v212 = vpop.f32.mrf.mxu0
    %213 = vmatprep.mubr.f32.mxu0 0.0
    %214 = vmatmul.mubr.f32.gmra.mxu0 %v114
    %v215 = vpop.f32.mrf.mxu0
    %v216 = vadd.f32 %v92, %v215
    %v217 = vpop.f32.mrf.mxu0
    %218 = vmatprep.mubr.f32.mxu0 0.0
    %219 = vmatmul.mubr.f32.gmra.mxu0 %v117
    %v220 = vpop.f32.mrf.mxu0
    %v221 = vadd.f32 %v92, %v220
    %v222 = vpop.f32.mrf.mxu0
    %223 = vdwg.mxu0
    %224 = vst [vmem:[#allocation2] sm:$0xff] %v186
    %225 = vst [vmem:[#allocation2 + $0x8] sm:$0xff] %v191
    %226 = vst [vmem:[#allocation2 + $0x10] sm:$0xff] %v196
    %227 = vst [vmem:[#allocation2 + $0x18] sm:$0xff] %v201
    %228 = vst [vmem:[#allocation2 + $0x20] sm:$0xff] %v206
    %229 = vst [vmem:[#allocation2 + $0x28] sm:$0xff] %v211
    %230 = vst [vmem:[#allocation2 + $0x30] sm:$0xff] %v216
    %231 = vst [vmem:[#allocation2 + $0x38] sm:$0xff] %v221
    %v232 = vld [vmem:[#allocation2] sm:$0xff]
    %vm233 = vcmask 261120
    %v235 = vsel %vm233, 0.0, 0
    %237 = vmatprep.subr.mxu0 0.0
    %238 = vmatpush1.msra.mxu0 0.0
    %239 = vmatprep.subr.mxu0 0.0
    %240 = vmatpush1.msra.mxu0 0.0
    %241 = vmatprep.subr.mxu0 0.0
    %242 = vmatpush1.msra.mxu0 0.0
    %243 = vmatprep.subr.mxu0 0.0
    %244 = vmatpush1.msra.mxu0 0.0
    %245 = vmatprep.subr.mxu0 0.0
    %246 = vmatpush1.msra.mxu0 0.0
    %247 = vmatprep.subr.mxu0 0.0
    %248 = vmatpush1.msra.mxu0 0.0
    %249 = vmatprep.subr.mxu0 0.0
    %250 = vmatpush1.msra.mxu0 0.0
    %251 = vmatprep.subr.mxu0 0.0
    %252 = vmatpush1.msra.mxu0 0.0
    %253 = vmatprep.subr.mxu0 0.0
    %254 = vmatpush1.msra.mxu0 0.0
    %255 = vmatprep.subr.mxu0 0.0
    %256 = vmatpush1.msra.mxu0 0.0
    %257 = vmatprep.subr.mxu0 0.0
    %258 = vmatpush1.msra.mxu0 0.0
    %259 = vmatprep.subr.mxu0 0.0
    %260 = vmatpush1.msra.mxu0 0.0
    %261 = vmatprep.subr.mxu0 0.0
    %262 = vmatpush1.msra.mxu0 %v70
    %263 = vmatprep.subr.mxu0 0.0
    %264 = vmatpush1.msra.mxu0 %v69
    %265 = vmatprep.subr.mxu0 0.0
    %266 = vmatpush1.msra.mxu0 %v68
    %267 = vmatprep.subr.mxu0 0.0
    %268 = vmatpush1.msra.mxu0 %v67
    %269 = vmatprep.subr.mxu0 0.0
    %270 = vmatpush2.msra.mxu0 0.0
    %271 = vmatprep.subr.mxu0 0.0
    %272 = vmatpush2.msra.mxu0 0.0
    %273 = vmatprep.subr.mxu0 0.0
    %274 = vmatpush2.msra.mxu0 0.0
    %275 = vmatprep.subr.mxu0 0.0
    %276 = vmatpush2.msra.mxu0 0.0
    %277 = vmatprep.subr.mxu0 0.0
    %278 = vmatpush2.msra.mxu0 0.0
    %279 = vmatprep.subr.mxu0 0.0
    %280 = vmatpush2.msra.mxu0 0.0
    %281 = vmatprep.subr.mxu0 0.0
    %282 = vmatpush2.msra.mxu0 0.0
    %283 = vmatprep.subr.mxu0 0.0
    %284 = vmatpush2.msra.mxu0 0.0
    %285 = vmatprep.subr.mxu0 0.0
    %286 = vmatpush2.msra.mxu0 0.0
    %287 = vmatprep.subr.mxu0 0.0
    %288 = vmatpush2.msra.mxu0 0.0
    %289 = vmatprep.subr.mxu0 0.0
    %290 = vmatpush2.msra.mxu0 0.0
    %291 = vmatprep.subr.mxu0 0.0
    %292 = vmatpush2.msra.mxu0 0.0
    %293 = vmatprep.subr.mxu0 0.0
    %294 = vmatpush2.msra.mxu0 0.0
    %295 = vmatprep.subr.mxu0 0.0
    %296 = vmatpush2.msra.mxu0 0.0
    %297 = vmatprep.subr.mxu0 0.0
    %298 = vmatpush2.msra.mxu0 0.0
    %299 = vmatprep.subr.mxu0 0.0
    %300 = vmatpush2.msra.mxu0 0.0
    %301 = vmatprep.mubr.f32.mxu0 0.0
    %302 = vmatmul.mubr.f32.gmra.mxu0 %v235
    %v303 = vpop.f32.mrf.mxu0
    %v304 = vadd.f32 %v76, %v303
    %v305 = vpop.f32.mrf.mxu0
    %306 = vdwg.mxu0
    %v307 = vadd.f32 %v232, %v304
    %v308 = vxor.u32 %v307, 2147483648
    %v309 = vmul.f32 %v308, 1.442695
    %v310 = vpow.pop %v309
    %v311 = vadd.f32 %v310, 1.0
    %v312 = vrcp.pop %v311
    %v313 = vmul.f32 1.0, %v312
    %315 = vrot.lane.b32.xlu0 %v304, 64
    %v316 = vpop.permute.xlu0 %315
    %v318 = vmul.f32 %v313, %v316
    %320 = vrot.lane.b32.xlu0 %v318, 64
    %v321 = vpop.permute.xlu0 %320
    %v323 = vadd.f32 %v232, %v321
    %v324 = vtanh.pop %v323
    %v325 = vsub.f32 1.0, %v313
    %327 = vrot.lane.b32.xlu0 %v324, 96
    %v328 = vpop.permute.xlu0 %327
    %v330 = vmul.f32 %v325, %v328
    %v331 = vmul.f32 %v313, 0.0
    %v332 = vadd.f32 %v330, %v331
    %334 = vrot.lane.b32.xlu0 %v332, 96
    %v335 = vpop.permute.xlu0 %334
    %337 = vst.msk [vmem:[#allocation3] sm:$0xff] %vm233, %v335
    %s338 = scalar_lea.vmem [#allocation2], 8
    %v339 = vld [vmem:[%s338] sm:$0xff]
    %v340 = vsel %vm233, %v335, 0
    %342 = vmatprep.subr.mxu0 0.0
    %343 = vmatpush1.msra.mxu0 0.0
    %344 = vmatprep.subr.mxu0 0.0
    %345 = vmatpush1.msra.mxu0 0.0
    %346 = vmatprep.subr.mxu0 0.0
    %347 = vmatpush1.msra.mxu0 0.0
    %348 = vmatprep.subr.mxu0 0.0
    %349 = vmatpush1.msra.mxu0 0.0
    %350 = vmatprep.subr.mxu0 0.0
    %351 = vmatpush1.msra.mxu0 0.0
    %352 = vmatprep.subr.mxu0 0.0
    %353 = vmatpush1.msra.mxu0 0.0
    %354 = vmatprep.subr.mxu0 0.0
    %355 = vmatpush1.msra.mxu0 0.0
    %356 = vmatprep.subr.mxu0 0.0
    %357 = vmatpush1.msra.mxu0 0.0
    %358 = vmatprep.subr.mxu0 0.0
    %359 = vmatpush1.msra.mxu0 0.0
    %360 = vmatprep.subr.mxu0 0.0
    %361 = vmatpush1.msra.mxu0 0.0
    %362 = vmatprep.subr.mxu0 0.0
    %363 = vmatpush1.msra.mxu0 0.0
    %364 = vmatprep.subr.mxu0 0.0
    %365 = vmatpush1.msra.mxu0 0.0
    %366 = vmatprep.subr.mxu0 0.0
    %367 = vmatpush1.msra.mxu0 %v70
    %368 = vmatprep.subr.mxu0 0.0
    %369 = vmatpush1.msra.mxu0 %v69
    %370 = vmatprep.subr.mxu0 0.0
    %371 = vmatpush1.msra.mxu0 %v68
    %372 = vmatprep.subr.mxu0 0.0
    %373 = vmatpush1.msra.mxu0 %v67
    %374 = vmatprep.subr.mxu0 0.0
    %375 = vmatpush2.msra.mxu0 0.0
    %376 = vmatprep.subr.mxu0 0.0
    %377 = vmatpush2.msra.mxu0 0.0
    %378 = vmatprep.subr.mxu0 0.0
    %379 = vmatpush2.msra.mxu0 0.0
    %380 = vmatprep.subr.mxu0 0.0
    %381 = vmatpush2.msra.mxu0 0.0
    %382 = vmatprep.subr.mxu0 0.0
    %383 = vmatpush2.msra.mxu0 0.0
    %384 = vmatprep.subr.mxu0 0.0
    %385 = vmatpush2.msra.mxu0 0.0
    %386 = vmatprep.subr.mxu0 0.0
    %387 = vmatpush2.msra.mxu0 0.0
    %388 = vmatprep.subr.mxu0 0.0
    %389 = vmatpush2.msra.mxu0 0.0
    %390 = vmatprep.subr.mxu0 0.0
    %391 = vmatpush2.msra.mxu0 0.0
    %392 = vmatprep.subr.mxu0 0.0
    %393 = vmatpush2.msra.mxu0 0.0
    %394 = vmatprep.subr.mxu0 0.0
    %395 = vmatpush2.msra.mxu0 0.0
    %396 = vmatprep.subr.mxu0 0.0
    %397 = vmatpush2.msra.mxu0 0.0
    %398 = vmatprep.subr.mxu0 0.0
    %399 = vmatpush2.msra.mxu0 0.0
    %400 = vmatprep.subr.mxu0 0.0
    %401 = vmatpush2.msra.mxu0 0.0
    %402 = vmatprep.subr.mxu0 0.0
    %403 = vmatpush2.msra.mxu0 0.0
    %404 = vmatprep.subr.mxu0 0.0
    %405 = vmatpush2.msra.mxu0 0.0
    %406 = vmatprep.mubr.f32.mxu0 0.0
    %407 = vmatmul.mubr.f32.gmra.mxu0 %v340
    %v408 = vpop.f32.mrf.mxu0
    %v409 = vadd.f32 %v76, %v408
    %v410 = vpop.f32.mrf.mxu0
    %411 = vdwg.mxu0
    %v412 = vadd.f32 %v339, %v409
    %v413 = vxor.u32 %v412, 2147483648
    %v414 = vmul.f32 %v413, 1.442695
    %v415 = vpow.pop %v414
    %v416 = vadd.f32 %v415, 1.0
    %v417 = vrcp.pop %v416
    %v418 = vmul.f32 1.0, %v417
    %420 = vrot.lane.b32.xlu0 %v409, 64
    %v421 = vpop.permute.xlu0 %420
    %v423 = vmul.f32 %v418, %v421
    %425 = vrot.lane.b32.xlu0 %v423, 64
    %v426 = vpop.permute.xlu0 %425
    %v428 = vadd.f32 %v339, %v426
    %v429 = vtanh.pop %v428
    %v430 = vsub.f32 1.0, %v418
    %432 = vrot.lane.b32.xlu0 %v429, 96
    %v433 = vpop.permute.xlu0 %432
    %v435 = vmul.f32 %v430, %v433
    %v436 = vmul.f32 %v418, %v332
    %v437 = vadd.f32 %v435, %v436
    %439 = vrot.lane.b32.xlu0 %v437, 96
    %v440 = vpop.permute.xlu0 %439
    %s442 = scalar_lea.vmem [#allocation3], 8
    %443 = vst.msk [vmem:[%s442] sm:$0xff] %vm233, %v440
    %s444 = scalar_lea.vmem [#allocation2], 16
    %v445 = vld [vmem:[%s444] sm:$0xff]
    %v446 = vsel %vm233, %v440, 0
    %448 = vmatprep.subr.mxu0 0.0
    %449 = vmatpush1.msra.mxu0 0.0
    %450 = vmatprep.subr.mxu0 0.0
    %451 = vmatpush1.msra.mxu0 0.0
    %452 = vmatprep.subr.mxu0 0.0
    %453 = vmatpush1.msra.mxu0 0.0
    %454 = vmatprep.subr.mxu0 0.0
    %455 = vmatpush1.msra.mxu0 0.0
    %456 = vmatprep.subr.mxu0 0.0
    %457 = vmatpush1.msra.mxu0 0.0
    %458 = vmatprep.subr.mxu0 0.0
    %459 = vmatpush1.msra.mxu0 0.0
    %460 = vmatprep.subr.mxu0 0.0
    %461 = vmatpush1.msra.mxu0 0.0
    %462 = vmatprep.subr.mxu0 0.0
    %463 = vmatpush1.msra.mxu0 0.0
    %464 = vmatprep.subr.mxu0 0.0
    %465 = vmatpush1.msra.mxu0 0.0
    %466 = vmatprep.subr.mxu0 0.0
    %467 = vmatpush1.msra.mxu0 0.0
    %468 = vmatprep.subr.mxu0 0.0
    %469 = vmatpush1.msra.mxu0 0.0
    %470 = vmatprep.subr.mxu0 0.0
    %471 = vmatpush1.msra.mxu0 0.0
    %472 = vmatprep.subr.mxu0 0.0
    %473 = vmatpush1.msra.mxu0 %v70
    %474 = vmatprep.subr.mxu0 0.0
    %475 = vmatpush1.msra.mxu0 %v69
    %476 = vmatprep.subr.mxu0 0.0
    %477 = vmatpush1.msra.mxu0 %v68
    %478 = vmatprep.subr.mxu0 0.0
    %479 = vmatpush1.msra.mxu0 %v67
    %480 = vmatprep.subr.mxu0 0.0
    %481 = vmatpush2.msra.mxu0 0.0
    %482 = vmatprep.subr.mxu0 0.0
    %483 = vmatpush2.msra.mxu0 0.0
    %484 = vmatprep.subr.mxu0 0.0
    %485 = vmatpush2.msra.mxu0 0.0
    %486 = vmatprep.subr.mxu0 0.0
    %487 = vmatpush2.msra.mxu0 0.0
    %488 = vmatprep.subr.mxu0 0.0
    %489 = vmatpush2.msra.mxu0 0.0
    %490 = vmatprep.subr.mxu0 0.0
    %491 = vmatpush2.msra.mxu0 0.0
    %492 = vmatprep.subr.mxu0 0.0
    %493 = vmatpush2.msra.mxu0 0.0
    %494 = vmatprep.subr.mxu0 0.0
    %495 = vmatpush2.msra.mxu0 0.0
    %496 = vmatprep.subr.mxu0 0.0
    %497 = vmatpush2.msra.mxu0 0.0
    %498 = vmatprep.subr.mxu0 0.0
    %499 = vmatpush2.msra.mxu0 0.0
    %500 = vmatprep.subr.mxu0 0.0
    %501 = vmatpush2.msra.mxu0 0.0
    %502 = vmatprep.subr.mxu0 0.0
    %503 = vmatpush2.msra.mxu0 0.0
    %504 = vmatprep.subr.mxu0 0.0
    %505 = vmatpush2.msra.mxu0 0.0
    %506 = vmatprep.subr.mxu0 0.0
    %507 = vmatpush2.msra.mxu0 0.0
    %508 = vmatprep.subr.mxu0 0.0
    %509 = vmatpush2.msra.mxu0 0.0
    %510 = vmatprep.subr.mxu0 0.0
    %511 = vmatpush2.msra.mxu0 0.0
    %512 = vmatprep.mubr.f32.mxu0 0.0
    %513 = vmatmul.mubr.f32.gmra.mxu0 %v446
    %v514 = vpop.f32.mrf.mxu0
    %v515 = vadd.f32 %v76, %v514
    %v516 = vpop.f32.mrf.mxu0
    %517 = vdwg.mxu0
    %v518 = vadd.f32 %v445, %v515
    %v519 = vxor.u32 %v518, 2147483648
    %v520 = vmul.f32 %v519, 1.442695
    %v521 = vpow.pop %v520
    %v522 = vadd.f32 %v521, 1.0
    %v523 = vrcp.pop %v522
    %v524 = vmul.f32 1.0, %v523
    %526 = vrot.lane.b32.xlu0 %v515, 64
    %v527 = vpop.permute.xlu0 %526
    %v529 = vmul.f32 %v524, %v527
    %531 = vrot.lane.b32.xlu0 %v529, 64
    %v532 = vpop.permute.xlu0 %531
    %v534 = vadd.f32 %v445, %v532
    %v535 = vtanh.pop %v534
    %v536 = vsub.f32 1.0, %v524
    %538 = vrot.lane.b32.xlu0 %v535, 96
    %v539 = vpop.permute.xlu0 %538
    %v541 = vmul.f32 %v536, %v539
    %v542 = vmul.f32 %v524, %v437
    %v543 = vadd.f32 %v541, %v542
    %545 = vrot.lane.b32.xlu0 %v543, 96
    %v546 = vpop.permute.xlu0 %545
    %s548 = scalar_lea.vmem [#allocation3], 16
    %549 = vst.msk [vmem:[%s548] sm:$0xff] %vm233, %v546
    %s550 = scalar_lea.vmem [#allocation2], 24
    %v551 = vld [vmem:[%s550] sm:$0xff]
    %v552 = vsel %vm233, %v546, 0
    %554 = vmatprep.subr.mxu0 0.0
    %555 = vmatpush1.msra.mxu0 0.0
    %556 = vmatprep.subr.mxu0 0.0
    %557 = vmatpush1.msra.mxu0 0.0
    %558 = vmatprep.subr.mxu0 0.0
    %559 = vmatpush1.msra.mxu0 0.0
    %560 = vmatprep.subr.mxu0 0.0
    %561 = vmatpush1.msra.mxu0 0.0
    %562 = vmatprep.subr.mxu0 0.0
    %563 = vmatpush1.msra.mxu0 0.0
    %564 = vmatprep.subr.mxu0 0.0
    %565 = vmatpush1.msra.mxu0 0.0
    %566 = vmatprep.subr.mxu0 0.0
    %567 = vmatpush1.msra.mxu0 0.0
    %568 = vmatprep.subr.mxu0 0.0
    %569 = vmatpush1.msra.mxu0 0.0
    %570 = vmatprep.subr.mxu0 0.0
    %571 = vmatpush1.msra.mxu0 0.0
    %572 = vmatprep.subr.mxu0 0.0
    %573 = vmatpush1.msra.mxu0 0.0
    %574 = vmatprep.subr.mxu0 0.0
    %575 = vmatpush1.msra.mxu0 0.0
    %576 = vmatprep.subr.mxu0 0.0
    %577 = vmatpush1.msra.mxu0 0.0
    %578 = vmatprep.subr.mxu0 0.0
    %579 = vmatpush1.msra.mxu0 %v70
    %580 = vmatprep.subr.mxu0 0.0
    %581 = vmatpush1.msra.mxu0 %v69
    %582 = vmatprep.subr.mxu0 0.0
    %583 = vmatpush1.msra.mxu0 %v68
    %584 = vmatprep.subr.mxu0 0.0
    %585 = vmatpush1.msra.mxu0 %v67
    %586 = vmatprep.subr.mxu0 0.0
    %587 = vmatpush2.msra.mxu0 0.0
    %588 = vmatprep.subr.mxu0 0.0
    %589 = vmatpush2.msra.mxu0 0.0
    %590 = vmatprep.subr.mxu0 0.0
    %591 = vmatpush2.msra.mxu0 0.0
    %592 = vmatprep.subr.mxu0 0.0
    %593 = vmatpush2.msra.mxu0 0.0
    %594 = vmatprep.subr.mxu0 0.0
    %595 = vmatpush2.msra.mxu0 0.0
    %596 = vmatprep.subr.mxu0 0.0
    %597 = vmatpush2.msra.mxu0 0.0
    %598 = vmatprep.subr.mxu0 0.0
    %599 = vmatpush2.msra.mxu0 0.0
    %600 = vmatprep.subr.mxu0 0.0
    %601 = vmatpush2.msra.mxu0 0.0
    %602 = vmatprep.subr.mxu0 0.0
    %603 = vmatpush2.msra.mxu0 0.0
    %604 = vmatprep.subr.mxu0 0.0
    %605 = vmatpush2.msra.mxu0 0.0
    %606 = vmatprep.subr.mxu0 0.0
    %607 = vmatpush2.msra.mxu0 0.0
    %608 = vmatprep.subr.mxu0 0.0
    %609 = vmatpush2.msra.mxu0 0.0
    %610 = vmatprep.subr.mxu0 0.0
    %611 = vmatpush2.msra.mxu0 0.0
    %612 = vmatprep.subr.mxu0 0.0
    %613 = vmatpush2.msra.mxu0 0.0
    %614 = vmatprep.subr.mxu0 0.0
    %615 = vmatpush2.msra.mxu0 0.0
    %616 = vmatprep.subr.mxu0 0.0
    %617 = vmatpush2.msra.mxu0 0.0
    %618 = vmatprep.mubr.f32.mxu0 0.0
    %619 = vmatmul.mubr.f32.gmra.mxu0 %v552
    %v620 = vpop.f32.mrf.mxu0
    %v621 = vadd.f32 %v76, %v620
    %v622 = vpop.f32.mrf.mxu0
    %623 = vdwg.mxu0
    %v624 = vadd.f32 %v551, %v621
    %v625 = vxor.u32 %v624, 2147483648
    %v626 = vmul.f32 %v625, 1.442695
    %v627 = vpow.pop %v626
    %v628 = vadd.f32 %v627, 1.0
    %v629 = vrcp.pop %v628
    %v630 = vmul.f32 1.0, %v629
    %632 = vrot.lane.b32.xlu0 %v621, 64
    %v633 = vpop.permute.xlu0 %632
    %v635 = vmul.f32 %v630, %v633
    %637 = vrot.lane.b32.xlu0 %v635, 64
    %v638 = vpop.permute.xlu0 %637
    %v640 = vadd.f32 %v551, %v638
    %v641 = vtanh.pop %v640
    %v642 = vsub.f32 1.0, %v630
    %644 = vrot.lane.b32.xlu0 %v641, 96
    %v645 = vpop.permute.xlu0 %644
    %v647 = vmul.f32 %v642, %v645
    %v648 = vmul.f32 %v630, %v543
    %v649 = vadd.f32 %v647, %v648
    %651 = vrot.lane.b32.xlu0 %v649, 96
    %v652 = vpop.permute.xlu0 %651
    %s654 = scalar_lea.vmem [#allocation3], 24
    %655 = vst.msk [vmem:[%s654] sm:$0xff] %vm233, %v652
    %s656 = scalar_lea.vmem [#allocation2], 32
    %v657 = vld [vmem:[%s656] sm:$0xff]
    %v658 = vsel %vm233, %v652, 0
    %660 = vmatprep.subr.mxu0 0.0
    %661 = vmatpush1.msra.mxu0 0.0
    %662 = vmatprep.subr.mxu0 0.0
    %663 = vmatpush1.msra.mxu0 0.0
    %664 = vmatprep.subr.mxu0 0.0
    %665 = vmatpush1.msra.mxu0 0.0
    %666 = vmatprep.subr.mxu0 0.0
    %667 = vmatpush1.msra.mxu0 0.0
    %668 = vmatprep.subr.mxu0 0.0
    %669 = vmatpush1.msra.mxu0 0.0
    %670 = vmatprep.subr.mxu0 0.0
    %671 = vmatpush1.msra.mxu0 0.0
    %672 = vmatprep.subr.mxu0 0.0
    %673 = vmatpush1.msra.mxu0 0.0
    %674 = vmatprep.subr.mxu0 0.0
    %675 = vmatpush1.msra.mxu0 0.0
    %676 = vmatprep.subr.mxu0 0.0
    %677 = vmatpush1.msra.mxu0 0.0
    %678 = vmatprep.subr.mxu0 0.0
    %679 = vmatpush1.msra.mxu0 0.0
    %680 = vmatprep.subr.mxu0 0.0
    %681 = vmatpush1.msra.mxu0 0.0
    %682 = vmatprep.subr.mxu0 0.0
    %683 = vmatpush1.msra.mxu0 0.0
    %684 = vmatprep.subr.mxu0 0.0
    %685 = vmatpush1.msra.mxu0 %v70
    %686 = vmatprep.subr.mxu0 0.0
    %687 = vmatpush1.msra.mxu0 %v69
    %688 = vmatprep.subr.mxu0 0.0
    %689 = vmatpush1.msra.mxu0 %v68
    %690 = vmatprep.subr.mxu0 0.0
    %691 = vmatpush1.msra.mxu0 %v67
    %692 = vmatprep.subr.mxu0 0.0
    %693 = vmatpush2.msra.mxu0 0.0
    %694 = vmatprep.subr.mxu0 0.0
    %695 = vmatpush2.msra.mxu0 0.0
    %696 = vmatprep.subr.mxu0 0.0
    %697 = vmatpush2.msra.mxu0 0.0
    %698 = vmatprep.subr.mxu0 0.0
    %699 = vmatpush2.msra.mxu0 0.0
    %700 = vmatprep.subr.mxu0 0.0
    %701 = vmatpush2.msra.mxu0 0.0
    %702 = vmatprep.subr.mxu0 0.0
    %703 = vmatpush2.msra.mxu0 0.0
    %704 = vmatprep.subr.mxu0 0.0
    %705 = vmatpush2.msra.mxu0 0.0
    %706 = vmatprep.subr.mxu0 0.0
    %707 = vmatpush2.msra.mxu0 0.0
    %708 = vmatprep.subr.mxu0 0.0
    %709 = vmatpush2.msra.mxu0 0.0
    %710 = vmatprep.subr.mxu0 0.0
    %711 = vmatpush2.msra.mxu0 0.0
    %712 = vmatprep.subr.mxu0 0.0
    %713 = vmatpush2.msra.mxu0 0.0
    %714 = vmatprep.subr.mxu0 0.0
    %715 = vmatpush2.msra.mxu0 0.0
    %716 = vmatprep.subr.mxu0 0.0
    %717 = vmatpush2.msra.mxu0 0.0
    %718 = vmatprep.subr.mxu0 0.0
    %719 = vmatpush2.msra.mxu0 0.0
    %720 = vmatprep.subr.mxu0 0.0
    %721 = vmatpush2.msra.mxu0 0.0
    %722 = vmatprep.subr.mxu0 0.0
    %723 = vmatpush2.msra.mxu0 0.0
    %724 = vmatprep.mubr.f32.mxu0 0.0
    %725 = vmatmul.mubr.f32.gmra.mxu0 %v658
    %v726 = vpop.f32.mrf.mxu0
    %v727 = vadd.f32 %v76, %v726
    %v728 = vpop.f32.mrf.mxu0
    %729 = vdwg.mxu0
    %v730 = vadd.f32 %v657, %v727
    %v731 = vxor.u32 %v730, 2147483648
    %v732 = vmul.f32 %v731, 1.442695
    %v733 = vpow.pop %v732
    %v734 = vadd.f32 %v733, 1.0
    %v735 = vrcp.pop %v734
    %v736 = vmul.f32 1.0, %v735
    %738 = vrot.lane.b32.xlu0 %v727, 64
    %v739 = vpop.permute.xlu0 %738
    %v741 = vmul.f32 %v736, %v739
    %743 = vrot.lane.b32.xlu0 %v741, 64
    %v744 = vpop.permute.xlu0 %743
    %v746 = vadd.f32 %v657, %v744
    %v747 = vtanh.pop %v746
    %v748 = vsub.f32 1.0, %v736
    %750 = vrot.lane.b32.xlu0 %v747, 96
    %v751 = vpop.permute.xlu0 %750
    %v753 = vmul.f32 %v748, %v751
    %v754 = vmul.f32 %v736, %v649
    %v755 = vadd.f32 %v753, %v754
    %757 = vrot.lane.b32.xlu0 %v755, 96
    %v758 = vpop.permute.xlu0 %757
    %s760 = scalar_lea.vmem [#allocation3], 32
    %761 = vst.msk [vmem:[%s760] sm:$0xff] %vm233, %v758
    %s762 = scalar_lea.vmem [#allocation2], 40
    %v763 = vld [vmem:[%s762] sm:$0xff]
    %v764 = vsel %vm233, %v758, 0
    %766 = vmatprep.subr.mxu0 0.0
    %767 = vmatpush1.msra.mxu0 0.0
    %768 = vmatprep.subr.mxu0 0.0
    %769 = vmatpush1.msra.mxu0 0.0
    %770 = vmatprep.subr.mxu0 0.0
    %771 = vmatpush1.msra.mxu0 0.0
    %772 = vmatprep.subr.mxu0 0.0
    %773 = vmatpush1.msra.mxu0 0.0
    %774 = vmatprep.subr.mxu0 0.0
    %775 = vmatpush1.msra.mxu0 0.0
    %776 = vmatprep.subr.mxu0 0.0
    %777 = vmatpush1.msra.mxu0 0.0
    %778 = vmatprep.subr.mxu0 0.0
    %779 = vmatpush1.msra.mxu0 0.0
    %780 = vmatprep.subr.mxu0 0.0
    %781 = vmatpush1.msra.mxu0 0.0
    %782 = vmatprep.subr.mxu0 0.0
    %783 = vmatpush1.msra.mxu0 0.0
    %784 = vmatprep.subr.mxu0 0.0
    %785 = vmatpush1.msra.mxu0 0.0
    %786 = vmatprep.subr.mxu0 0.0
    %787 = vmatpush1.msra.mxu0 0.0
    %788 = vmatprep.subr.mxu0 0.0
    %789 = vmatpush1.msra.mxu0 0.0
    %790 = vmatprep.subr.mxu0 0.0
    %791 = vmatpush1.msra.mxu0 %v70
    %792 = vmatprep.subr.mxu0 0.0
    %793 = vmatpush1.msra.mxu0 %v69
    %794 = vmatprep.subr.mxu0 0.0
    %795 = vmatpush1.msra.mxu0 %v68
    %796 = vmatprep.subr.mxu0 0.0
    %797 = vmatpush1.msra.mxu0 %v67
    %798 = vmatprep.subr.mxu0 0.0
    %799 = vmatpush2.msra.mxu0 0.0
    %800 = vmatprep.subr.mxu0 0.0
    %801 = vmatpush2.msra.mxu0 0.0
    %802 = vmatprep.subr.mxu0 0.0
    %803 = vmatpush2.msra.mxu0 0.0
    %804 = vmatprep.subr.mxu0 0.0
    %805 = vmatpush2.msra.mxu0 0.0
    %806 = vmatprep.subr.mxu0 0.0
    %807 = vmatpush2.msra.mxu0 0.0
    %808 = vmatprep.subr.mxu0 0.0
    %809 = vmatpush2.msra.mxu0 0.0
    %810 = vmatprep.subr.mxu0 0.0
    %811 = vmatpush2.msra.mxu0 0.0
    %812 = vmatprep.subr.mxu0 0.0
    %813 = vmatpush2.msra.mxu0 0.0
    %814 = vmatprep.subr.mxu0 0.0
    %815 = vmatpush2.msra.mxu0 0.0
    %816 = vmatprep.subr.mxu0 0.0
    %817 = vmatpush2.msra.mxu0 0.0
    %818 = vmatprep.subr.mxu0 0.0
    %819 = vmatpush2.msra.mxu0 0.0
    %820 = vmatprep.subr.mxu0 0.0
    %821 = vmatpush2.msra.mxu0 0.0
    %822 = vmatprep.subr.mxu0 0.0
    %823 = vmatpush2.msra.mxu0 0.0
    %824 = vmatprep.subr.mxu0 0.0
    %825 = vmatpush2.msra.mxu0 0.0
    %826 = vmatprep.subr.mxu0 0.0
    %827 = vmatpush2.msra.mxu0 0.0
    %828 = vmatprep.subr.mxu0 0.0
    %829 = vmatpush2.msra.mxu0 0.0
    %830 = vmatprep.mubr.f32.mxu0 0.0
    %831 = vmatmul.mubr.f32.gmra.mxu0 %v764
    %v832 = vpop.f32.mrf.mxu0
    %v833 = vadd.f32 %v76, %v832
    %v834 = vpop.f32.mrf.mxu0
    %835 = vdwg.mxu0
    %v836 = vadd.f32 %v763, %v833
    %v837 = vxor.u32 %v836, 2147483648
    %v838 = vmul.f32 %v837, 1.442695
    %v839 = vpow.pop %v838
    %v840 = vadd.f32 %v839, 1.0
    %v841 = vrcp.pop %v840
    %v842 = vmul.f32 1.0, %v841
    %844 = vrot.lane.b32.xlu0 %v833, 64
    %v845 = vpop.permute.xlu0 %844
    %v847 = vmul.f32 %v842, %v845
    %849 = vrot.lane.b32.xlu0 %v847, 64
    %v850 = vpop.permute.xlu0 %849
    %v852 = vadd.f32 %v763, %v850
    %v853 = vtanh.pop %v852
    %v854 = vsub.f32 1.0, %v842
    %856 = vrot.lane.b32.xlu0 %v853, 96
    %v857 = vpop.permute.xlu0 %856
    %v859 = vmul.f32 %v854, %v857
    %v860 = vmul.f32 %v842, %v755
    %v861 = vadd.f32 %v859, %v860
    %863 = vrot.lane.b32.xlu0 %v861, 96
    %v864 = vpop.permute.xlu0 %863
    %s866 = scalar_lea.vmem [#allocation3], 40
    %867 = vst.msk [vmem:[%s866] sm:$0xff] %vm233, %v864
    %s868 = scalar_lea.vmem [#allocation2], 48
    %v869 = vld [vmem:[%s868] sm:$0xff]
    %v870 = vsel %vm233, %v864, 0
    %872 = vmatprep.subr.mxu0 0.0
    %873 = vmatpush1.msra.mxu0 0.0
    %874 = vmatprep.subr.mxu0 0.0
    %875 = vmatpush1.msra.mxu0 0.0
    %876 = vmatprep.subr.mxu0 0.0
    %877 = vmatpush1.msra.mxu0 0.0
    %878 = vmatprep.subr.mxu0 0.0
    %879 = vmatpush1.msra.mxu0 0.0
    %880 = vmatprep.subr.mxu0 0.0
    %881 = vmatpush1.msra.mxu0 0.0
    %882 = vmatprep.subr.mxu0 0.0
    %883 = vmatpush1.msra.mxu0 0.0
    %884 = vmatprep.subr.mxu0 0.0
    %885 = vmatpush1.msra.mxu0 0.0
    %886 = vmatprep.subr.mxu0 0.0
    %887 = vmatpush1.msra.mxu0 0.0
    %888 = vmatprep.subr.mxu0 0.0
    %889 = vmatpush1.msra.mxu0 0.0
    %890 = vmatprep.subr.mxu0 0.0
    %891 = vmatpush1.msra.mxu0 0.0
    %892 = vmatprep.subr.mxu0 0.0
    %893 = vmatpush1.msra.mxu0 0.0
    %894 = vmatprep.subr.mxu0 0.0
    %895 = vmatpush1.msra.mxu0 0.0
    %896 = vmatprep.subr.mxu0 0.0
    %897 = vmatpush1.msra.mxu0 %v70
    %898 = vmatprep.subr.mxu0 0.0
    %899 = vmatpush1.msra.mxu0 %v69
    %900 = vmatprep.subr.mxu0 0.0
    %901 = vmatpush1.msra.mxu0 %v68
    %902 = vmatprep.subr.mxu0 0.0
    %903 = vmatpush1.msra.mxu0 %v67
    %904 = vmatprep.subr.mxu0 0.0
    %905 = vmatpush2.msra.mxu0 0.0
    %906 = vmatprep.subr.mxu0 0.0
    %907 = vmatpush2.msra.mxu0 0.0
    %908 = vmatprep.subr.mxu0 0.0
    %909 = vmatpush2.msra.mxu0 0.0
    %910 = vmatprep.subr.mxu0 0.0
    %911 = vmatpush2.msra.mxu0 0.0
    %912 = vmatprep.subr.mxu0 0.0
    %913 = vmatpush2.msra.mxu0 0.0
    %914 = vmatprep.subr.mxu0 0.0
    %915 = vmatpush2.msra.mxu0 0.0
    %916 = vmatprep.subr.mxu0 0.0
    %917 = vmatpush2.msra.mxu0 0.0
    %918 = vmatprep.subr.mxu0 0.0
    %919 = vmatpush2.msra.mxu0 0.0
    %920 = vmatprep.subr.mxu0 0.0
    %921 = vmatpush2.msra.mxu0 0.0
    %922 = vmatprep.subr.mxu0 0.0
    %923 = vmatpush2.msra.mxu0 0.0
    %924 = vmatprep.subr.mxu0 0.0
    %925 = vmatpush2.msra.mxu0 0.0
    %926 = vmatprep.subr.mxu0 0.0
    %927 = vmatpush2.msra.mxu0 0.0
    %928 = vmatprep.subr.mxu0 0.0
    %929 = vmatpush2.msra.mxu0 0.0
    %930 = vmatprep.subr.mxu0 0.0
    %931 = vmatpush2.msra.mxu0 0.0
    %932 = vmatprep.subr.mxu0 0.0
    %933 = vmatpush2.msra.mxu0 0.0
    %934 = vmatprep.subr.mxu0 0.0
    %935 = vmatpush2.msra.mxu0 0.0
    %936 = vmatprep.mubr.f32.mxu0 0.0
    %937 = vmatmul.mubr.f32.gmra.mxu0 %v870
    %v938 = vpop.f32.mrf.mxu0
    %v939 = vadd.f32 %v76, %v938
    %v940 = vpop.f32.mrf.mxu0
    %941 = vdwg.mxu0
    %v942 = vadd.f32 %v869, %v939
    %v943 = vxor.u32 %v942, 2147483648
    %v944 = vmul.f32 %v943, 1.442695
    %v945 = vpow.pop %v944
    %v946 = vadd.f32 %v945, 1.0
    %v947 = vrcp.pop %v946
    %v948 = vmul.f32 1.0, %v947
    %950 = vrot.lane.b32.xlu0 %v939, 64
    %v951 = vpop.permute.xlu0 %950
    %v953 = vmul.f32 %v948, %v951
    %955 = vrot.lane.b32.xlu0 %v953, 64
    %v956 = vpop.permute.xlu0 %955
    %v958 = vadd.f32 %v869, %v956
    %v959 = vtanh.pop %v958
    %v960 = vsub.f32 1.0, %v948
    %962 = vrot.lane.b32.xlu0 %v959, 96
    %v963 = vpop.permute.xlu0 %962
    %v965 = vmul.f32 %v960, %v963
    %v966 = vmul.f32 %v948, %v861
    %v967 = vadd.f32 %v965, %v966
    %969 = vrot.lane.b32.xlu0 %v967, 96
    %v970 = vpop.permute.xlu0 %969
    %s972 = scalar_lea.vmem [#allocation3], 48
    %973 = vst.msk [vmem:[%s972] sm:$0xff] %vm233, %v970
    %s974 = scalar_lea.vmem [#allocation2], 56
    %v975 = vld [vmem:[%s974] sm:$0xff]
    %v976 = vsel %vm233, %v970, 0
    %978 = vmatprep.subr.mxu0 0.0
    %979 = vmatpush1.msra.mxu0 0.0
    %980 = vmatprep.subr.mxu0 0.0
    %981 = vmatpush1.msra.mxu0 0.0
    %982 = vmatprep.subr.mxu0 0.0
    %983 = vmatpush1.msra.mxu0 0.0
    %984 = vmatprep.subr.mxu0 0.0
    %985 = vmatpush1.msra.mxu0 0.0
    %986 = vmatprep.subr.mxu0 0.0
    %987 = vmatpush1.msra.mxu0 0.0
    %988 = vmatprep.subr.mxu0 0.0
    %989 = vmatpush1.msra.mxu0 0.0
    %990 = vmatprep.subr.mxu0 0.0
    %991 = vmatpush1.msra.mxu0 0.0
    %992 = vmatprep.subr.mxu0 0.0
    %993 = vmatpush1.msra.mxu0 0.0
    %994 = vmatprep.subr.mxu0 0.0
    %995 = vmatpush1.msra.mxu0 0.0
    %996 = vmatprep.subr.mxu0 0.0
    %997 = vmatpush1.msra.mxu0 0.0
    %998 = vmatprep.subr.mxu0 0.0
    %999 = vmatpush1.msra.mxu0 0.0
    %1000 = vmatprep.subr.mxu0 0.0
    %1001 = vmatpush1.msra.mxu0 0.0
    %1002 = vmatprep.subr.mxu0 0.0
    %1003 = vmatpush1.msra.mxu0 %v70
    %1004 = vmatprep.subr.mxu0 0.0
    %1005 = vmatpush1.msra.mxu0 %v69
    %1006 = vmatprep.subr.mxu0 0.0
    %1007 = vmatpush1.msra.mxu0 %v68
    %1008 = vmatprep.subr.mxu0 0.0
    %1009 = vmatpush1.msra.mxu0 %v67
    %1010 = vmatprep.subr.mxu0 0.0
    %1011 = vmatpush2.msra.mxu0 0.0
    %1012 = vmatprep.subr.mxu0 0.0
    %1013 = vmatpush2.msra.mxu0 0.0
    %1014 = vmatprep.subr.mxu0 0.0
    %1015 = vmatpush2.msra.mxu0 0.0
    %1016 = vmatprep.subr.mxu0 0.0
    %1017 = vmatpush2.msra.mxu0 0.0
    %1018 = vmatprep.subr.mxu0 0.0
    %1019 = vmatpush2.msra.mxu0 0.0
    %1020 = vmatprep.subr.mxu0 0.0
    %1021 = vmatpush2.msra.mxu0 0.0
    %1022 = vmatprep.subr.mxu0 0.0
    %1023 = vmatpush2.msra.mxu0 0.0
    %1024 = vmatprep.subr.mxu0 0.0
    %1025 = vmatpush2.msra.mxu0 0.0
    %1026 = vmatprep.subr.mxu0 0.0
    %1027 = vmatpush2.msra.mxu0 0.0
    %1028 = vmatprep.subr.mxu0 0.0
    %1029 = vmatpush2.msra.mxu0 0.0
    %1030 = vmatprep.subr.mxu0 0.0
    %1031 = vmatpush2.msra.mxu0 0.0
    %1032 = vmatprep.subr.mxu0 0.0
    %1033 = vmatpush2.msra.mxu0 0.0
    %1034 = vmatprep.subr.mxu0 0.0
    %1035 = vmatpush2.msra.mxu0 0.0
    %1036 = vmatprep.subr.mxu0 0.0
    %1037 = vmatpush2.msra.mxu0 0.0
    %1038 = vmatprep.subr.mxu0 0.0
    %1039 = vmatpush2.msra.mxu0 0.0
    %1040 = vmatprep.subr.mxu0 0.0
    %1041 = vmatpush2.msra.mxu0 0.0
    %1042 = vmatprep.mubr.f32.mxu0 0.0
    %1043 = vmatmul.mubr.f32.gmra.mxu0 %v976
    %v1044 = vpop.f32.mrf.mxu0
    %v1045 = vadd.f32 %v76, %v1044
    %v1046 = vpop.f32.mrf.mxu0
    %1047 = vdwg.mxu0
    %v1048 = vadd.f32 %v975, %v1045
    %v1049 = vxor.u32 %v1048, 2147483648
    %v1050 = vmul.f32 %v1049, 1.442695
    %v1051 = vpow.pop %v1050
    %v1052 = vadd.f32 %v1051, 1.0
    %v1053 = vrcp.pop %v1052
    %v1054 = vmul.f32 1.0, %v1053
    %1056 = vrot.lane.b32.xlu0 %v1045, 64
    %v1057 = vpop.permute.xlu0 %1056
    %v1059 = vmul.f32 %v1054, %v1057
    %1061 = vrot.lane.b32.xlu0 %v1059, 64
    %v1062 = vpop.permute.xlu0 %1061
    %v1064 = vadd.f32 %v975, %v1062
    %v1065 = vtanh.pop %v1064
    %v1066 = vsub.f32 1.0, %v1054
    %1068 = vrot.lane.b32.xlu0 %v1065, 96
    %v1069 = vpop.permute.xlu0 %1068
    %v1071 = vmul.f32 %v1066, %v1069
    %v1072 = vmul.f32 %v1054, %v967
    %v1073 = vadd.f32 %v1071, %v1072
    %1075 = vrot.lane.b32.xlu0 %v1073, 96
    %v1076 = vpop.permute.xlu0 %1075
    %s1078 = scalar_lea.vmem [#allocation3], 56
    %1079 = vst.msk [vmem:[%s1078] sm:$0xff] %vm233, %v1076
    %v1080 = vld [vmem:[#allocation4] sm:$0xff]
    %v1081 = vld [vmem:[#allocation4 + $0x8] sm:$0xff]
    %v1082 = vld [vmem:[#allocation4 + $0x10] sm:$0xff]
    %v1083 = vld [vmem:[#allocation4 + $0x18] sm:$0xff]
    %v1084 = vld [vmem:[%s8] sm:$0x1]
    %v1086 = vlaneseq
    %v1087 = vshrl.u32 %v1086, 7
    %v1088 = vsub.s32 0, %v1087
    %v1089 = vrot.slane %v1084, %v1088
    %v1091 = vld [vmem:[#allocation3] sm:$0xff]
    %v1092 = vld [vmem:[#allocation3 + $0x8] sm:$0xff]
    %v1093 = vld [vmem:[#allocation3 + $0x10] sm:$0xff]
    %v1094 = vld [vmem:[#allocation3 + $0x18] sm:$0xff]
    %v1095 = vld [vmem:[#allocation3 + $0x20] sm:$0xff]
    %v1096 = vld [vmem:[#allocation3 + $0x28] sm:$0xff]
    %v1097 = vld [vmem:[#allocation3 + $0x30] sm:$0xff]
    %v1098 = vld [vmem:[#allocation3 + $0x38] sm:$0xff]
    %v1099 = vld [vmem:[%s5] sm:$0xff]
    %v1100 = vld [vmem:[%s5 + $0x8] sm:$0xff]
    %v1101 = vld [vmem:[%s5 + $0x10] sm:$0xff]
    %v1102 = vld [vmem:[%s5 + $0x18] sm:$0xff]
    %v1103 = vld [vmem:[%s7] sm:$0x1]
    %v1105 = vlaneseq
    %v1106 = vshrl.u32 %v1105, 7
    %v1107 = vsub.s32 0, %v1106
    %v1108 = vrot.slane %v1103, %v1107
    %v1111 = vsel %vm233, %v1091, 0
    %v1114 = vsel %vm233, %v1092, 0
    %v1117 = vsel %vm233, %v1093, 0
    %v1120 = vsel %vm233, %v1094, 0
    %v1123 = vsel %vm233, %v1095, 0
    %v1126 = vsel %vm233, %v1096, 0
    %v1129 = vsel %vm233, %v1097, 0
    %v1132 = vsel %vm233, %v1098, 0
    %1134 = vmatprep.subr.mxu0 0.0
    %1135 = vmatpush1.msra.mxu0 0.0
    %1136 = vmatprep.subr.mxu0 0.0
    %1137 = vmatpush1.msra.mxu0 0.0
    %1138 = vmatprep.subr.mxu0 0.0
    %1139 = vmatpush1.msra.mxu0 0.0
    %1140 = vmatprep.subr.mxu0 0.0
    %1141 = vmatpush1.msra.mxu0 0.0
    %1142 = vmatprep.subr.mxu0 0.0
    %1143 = vmatpush1.msra.mxu0 0.0
    %1144 = vmatprep.subr.mxu0 0.0
    %1145 = vmatpush1.msra.mxu0 0.0
    %1146 = vmatprep.subr.mxu0 0.0
    %1147 = vmatpush1.msra.mxu0 0.0
    %1148 = vmatprep.subr.mxu0 0.0
    %1149 = vmatpush1.msra.mxu0 0.0
    %1150 = vmatprep.subr.mxu0 0.0
    %1151 = vmatpush1.msra.mxu0 0.0
    %1152 = vmatprep.subr.mxu0 0.0
    %1153 = vmatpush1.msra.mxu0 0.0
    %1154 = vmatprep.subr.mxu0 0.0
    %1155 = vmatpush1.msra.mxu0 0.0
    %1156 = vmatprep.subr.mxu0 0.0
    %1157 = vmatpush1.msra.mxu0 0.0
    %1158 = vmatprep.subr.mxu0 0.0
    %1159 = vmatpush1.msra.mxu0 %v1102
    %1160 = vmatprep.subr.mxu0 0.0
    %1161 = vmatpush1.msra.mxu0 %v1101
    %1162 = vmatprep.subr.mxu0 0.0
    %1163 = vmatpush1.msra.mxu0 %v1100
    %1164 = vmatprep.subr.mxu0 0.0
    %1165 = vmatpush1.msra.mxu0 %v1099
    %1166 = vmatprep.subr.mxu0 0.0
    %1167 = vmatpush2.msra.mxu0 0.0
    %1168 = vmatprep.subr.mxu0 0.0
    %1169 = vmatpush2.msra.mxu0 0.0
    %1170 = vmatprep.subr.mxu0 0.0
    %1171 = vmatpush2.msra.mxu0 0.0
    %1172 = vmatprep.subr.mxu0 0.0
    %1173 = vmatpush2.msra.mxu0 0.0
    %1174 = vmatprep.subr.mxu0 0.0
    %1175 = vmatpush2.msra.mxu0 0.0
    %1176 = vmatprep.subr.mxu0 0.0
    %1177 = vmatpush2.msra.mxu0 0.0
    %1178 = vmatprep.subr.mxu0 0.0
    %1179 = vmatpush2.msra.mxu0 0.0
    %1180 = vmatprep.subr.mxu0 0.0
    %1181 = vmatpush2.msra.mxu0 0.0
    %1182 = vmatprep.subr.mxu0 0.0
    %1183 = vmatpush2.msra.mxu0 0.0
    %1184 = vmatprep.subr.mxu0 0.0
    %1185 = vmatpush2.msra.mxu0 0.0
    %1186 = vmatprep.subr.mxu0 0.0
    %1187 = vmatpush2.msra.mxu0 0.0
    %1188 = vmatprep.subr.mxu0 0.0
    %1189 = vmatpush2.msra.mxu0 0.0
    %1190 = vmatprep.subr.mxu0 0.0
    %1191 = vmatpush2.msra.mxu0 0.0
    %1192 = vmatprep.subr.mxu0 0.0
    %1193 = vmatpush2.msra.mxu0 0.0
    %1194 = vmatprep.subr.mxu0 0.0
    %1195 = vmatpush2.msra.mxu0 0.0
    %1196 = vmatprep.subr.mxu0 0.0
    %1197 = vmatpush2.msra.mxu0 0.0
    %1198 = vmatprep.mubr.f32.mxu0 0.0
    %1199 = vmatmul.mubr.f32.gmra.mxu0 %v1111
    %v1200 = vpop.f32.mrf.mxu0
    %v1201 = vadd.f32 %v1108, %v1200
    %v1202 = vpop.f32.mrf.mxu0
    %1203 = vmatprep.mubr.f32.mxu0 0.0
    %1204 = vmatmul.mubr.f32.gmra.mxu0 %v1114
    %v1205 = vpop.f32.mrf.mxu0
    %v1206 = vadd.f32 %v1108, %v1205
    %v1207 = vpop.f32.mrf.mxu0
    %1208 = vmatprep.mubr.f32.mxu0 0.0
    %1209 = vmatmul.mubr.f32.gmra.mxu0 %v1117
    %v1210 = vpop.f32.mrf.mxu0
    %v1211 = vadd.f32 %v1108, %v1210
    %v1212 = vpop.f32.mrf.mxu0
    %1213 = vmatprep.mubr.f32.mxu0 0.0
    %1214 = vmatmul.mubr.f32.gmra.mxu0 %v1120
    %v1215 = vpop.f32.mrf.mxu0
    %v1216 = vadd.f32 %v1108, %v1215
    %v1217 = vpop.f32.mrf.mxu0
    %1218 = vmatprep.mubr.f32.mxu0 0.0
    %1219 = vmatmul.mubr.f32.gmra.mxu0 %v1123
    %v1220 = vpop.f32.mrf.mxu0
    %v1221 = vadd.f32 %v1108, %v1220
    %v1222 = vpop.f32.mrf.mxu0
    %1223 = vmatprep.mubr.f32.mxu0 0.0
    %1224 = vmatmul.mubr.f32.gmra.mxu0 %v1126
    %v1225 = vpop.f32.mrf.mxu0
    %v1226 = vadd.f32 %v1108, %v1225
    %v1227 = vpop.f32.mrf.mxu0
    %1228 = vmatprep.mubr.f32.mxu0 0.0
    %1229 = vmatmul.mubr.f32.gmra.mxu0 %v1129
    %v1230 = vpop.f32.mrf.mxu0
    %v1231 = vadd.f32 %v1108, %v1230
    %v1232 = vpop.f32.mrf.mxu0
    %1233 = vmatprep.mubr.f32.mxu0 0.0
    %1234 = vmatmul.mubr.f32.gmra.mxu0 %v1132
    %v1235 = vpop.f32.mrf.mxu0
    %v1236 = vadd.f32 %v1108, %v1235
    %v1237 = vpop.f32.mrf.mxu0
    %1238 = vdwg.mxu0
    %1239 = vst [vmem:[#allocation2] sm:$0xff] %v1201
    %1240 = vst [vmem:[#allocation2 + $0x8] sm:$0xff] %v1206
    %1241 = vst [vmem:[#allocation2 + $0x10] sm:$0xff] %v1211
    %1242 = vst [vmem:[#allocation2 + $0x18] sm:$0xff] %v1216
    %1243 = vst [vmem:[#allocation2 + $0x20] sm:$0xff] %v1221
    %1244 = vst [vmem:[#allocation2 + $0x28] sm:$0xff] %v1226
    %1245 = vst [vmem:[#allocation2 + $0x30] sm:$0xff] %v1231
    %1246 = vst [vmem:[#allocation2 + $0x38] sm:$0xff] %v1236
    %v1247 = vld [vmem:[#allocation2] sm:$0xff]
    %1248 = vmatprep.subr.mxu0 0.0
    %1249 = vmatpush1.msra.mxu0 0.0
    %1250 = vmatprep.subr.mxu0 0.0
    %1251 = vmatpush1.msra.mxu0 0.0
    %1252 = vmatprep.subr.mxu0 0.0
    %1253 = vmatpush1.msra.mxu0 0.0
    %1254 = vmatprep.subr.mxu0 0.0
    %1255 = vmatpush1.msra.mxu0 0.0
    %1256 = vmatprep.subr.mxu0 0.0
    %1257 = vmatpush1.msra.mxu0 0.0
    %1258 = vmatprep.subr.mxu0 0.0
    %1259 = vmatpush1.msra.mxu0 0.0
    %1260 = vmatprep.subr.mxu0 0.0
    %1261 = vmatpush1.msra.mxu0 0.0
    %1262 = vmatprep.subr.mxu0 0.0
    %1263 = vmatpush1.msra.mxu0 0.0
    %1264 = vmatprep.subr.mxu0 0.0
    %1265 = vmatpush1.msra.mxu0 0.0
    %1266 = vmatprep.subr.mxu0 0.0
    %1267 = vmatpush1.msra.mxu0 0.0
    %1268 = vmatprep.subr.mxu0 0.0
    %1269 = vmatpush1.msra.mxu0 0.0
    %1270 = vmatprep.subr.mxu0 0.0
    %1271 = vmatpush1.msra.mxu0 0.0
    %1272 = vmatprep.subr.mxu0 0.0
    %1273 = vmatpush1.msra.mxu0 %v1083
    %1274 = vmatprep.subr.mxu0 0.0
    %1275 = vmatpush1.msra.mxu0 %v1082
    %1276 = vmatprep.subr.mxu0 0.0
    %1277 = vmatpush1.msra.mxu0 %v1081
    %1278 = vmatprep.subr.mxu0 0.0
    %1279 = vmatpush1.msra.mxu0 %v1080
    %1280 = vmatprep.subr.mxu0 0.0
    %1281 = vmatpush2.msra.mxu0 0.0
    %1282 = vmatprep.subr.mxu0 0.0
    %1283 = vmatpush2.msra.mxu0 0.0
    %1284 = vmatprep.subr.mxu0 0.0
    %1285 = vmatpush2.msra.mxu0 0.0
    %1286 = vmatprep.subr.mxu0 0.0
    %1287 = vmatpush2.msra.mxu0 0.0
    %1288 = vmatprep.subr.mxu0 0.0
    %1289 = vmatpush2.msra.mxu0 0.0
    %1290 = vmatprep.subr.mxu0 0.0
    %1291 = vmatpush2.msra.mxu0 0.0
    %1292 = vmatprep.subr.mxu0 0.0
    %1293 = vmatpush2.msra.mxu0 0.0
    %1294 = vmatprep.subr.mxu0 0.0
    %1295 = vmatpush2.msra.mxu0 0.0
    %1296 = vmatprep.subr.mxu0 0.0
    %1297 = vmatpush2.msra.mxu0 0.0
    %1298 = vmatprep.subr.mxu0 0.0
    %1299 = vmatpush2.msra.mxu0 0.0
    %1300 = vmatprep.subr.mxu0 0.0
    %1301 = vmatpush2.msra.mxu0 0.0
    %1302 = vmatprep.subr.mxu0 0.0
    %1303 = vmatpush2.msra.mxu0 0.0
    %1304 = vmatprep.subr.mxu0 0.0
    %1305 = vmatpush2.msra.mxu0 0.0
    %1306 = vmatprep.subr.mxu0 0.0
    %1307 = vmatpush2.msra.mxu0 0.0
    %1308 = vmatprep.subr.mxu0 0.0
    %1309 = vmatpush2.msra.mxu0 0.0
    %1310 = vmatprep.subr.mxu0 0.0
    %1311 = vmatpush2.msra.mxu0 0.0
    %1312 = vmatprep.mubr.f32.mxu0 0.0
    %1313 = vmatmul.mubr.f32.gmra.mxu0 %v235
    %v1314 = vpop.f32.mrf.mxu0
    %v1315 = vadd.f32 %v1089, %v1314
    %v1316 = vpop.f32.mrf.mxu0
    %1317 = vdwg.mxu0
    %v1318 = vadd.f32 %v1247, %v1315
    %v1319 = vxor.u32 %v1318, 2147483648
    %v1320 = vmul.f32 %v1319, 1.442695
    %v1321 = vpow.pop %v1320
    %v1322 = vadd.f32 %v1321, 1.0
    %v1323 = vrcp.pop %v1322
    %v1324 = vmul.f32 1.0, %v1323
    %1326 = vrot.lane.b32.xlu0 %v1315, 64
    %v1327 = vpop.permute.xlu0 %1326
    %v1329 = vmul.f32 %v1324, %v1327
    %1331 = vrot.lane.b32.xlu0 %v1329, 64
    %v1332 = vpop.permute.xlu0 %1331
    %v1334 = vadd.f32 %v1247, %v1332
    %v1335 = vtanh.pop %v1334
    %v1336 = vsub.f32 1.0, %v1324
    %1338 = vrot.lane.b32.xlu0 %v1335, 96
    %v1339 = vpop.permute.xlu0 %1338
    %v1341 = vmul.f32 %v1336, %v1339
    %v1342 = vmul.f32 %v1324, 0.0
    %v1343 = vadd.f32 %v1341, %v1342
    %v1344 = vld [vmem:[%s338] sm:$0xff]
    %1346 = vrot.lane.b32.xlu0 %v1343, 96
    %v1347 = vpop.permute.xlu0 %1346
    %v1348 = vsel %vm233, %v1347, 0
    %1350 = vmatprep.subr.mxu0 0.0
    %1351 = vmatpush1.msra.mxu0 0.0
    %1352 = vmatprep.subr.mxu0 0.0
    %1353 = vmatpush1.msra.mxu0 0.0
    %1354 = vmatprep.subr.mxu0 0.0
    %1355 = vmatpush1.msra.mxu0 0.0
    %1356 = vmatprep.subr.mxu0 0.0
    %1357 = vmatpush1.msra.mxu0 0.0
    %1358 = vmatprep.subr.mxu0 0.0
    %1359 = vmatpush1.msra.mxu0 0.0
    %1360 = vmatprep.subr.mxu0 0.0
    %1361 = vmatpush1.msra.mxu0 0.0
    %1362 = vmatprep.subr.mxu0 0.0
    %1363 = vmatpush1.msra.mxu0 0.0
    %1364 = vmatprep.subr.mxu0 0.0
    %1365 = vmatpush1.msra.mxu0 0.0
    %1366 = vmatprep.subr.mxu0 0.0
    %1367 = vmatpush1.msra.mxu0 0.0
    %1368 = vmatprep.subr.mxu0 0.0
    %1369 = vmatpush1.msra.mxu0 0.0
    %1370 = vmatprep.subr.mxu0 0.0
    %1371 = vmatpush1.msra.mxu0 0.0
    %1372 = vmatprep.subr.mxu0 0.0
    %1373 = vmatpush1.msra.mxu0 0.0
    %1374 = vmatprep.subr.mxu0 0.0
    %1375 = vmatpush1.msra.mxu0 %v1083
    %1376 = vmatprep.subr.mxu0 0.0
    %1377 = vmatpush1.msra.mxu0 %v1082
    %1378 = vmatprep.subr.mxu0 0.0
    %1379 = vmatpush1.msra.mxu0 %v1081
    %1380 = vmatprep.subr.mxu0 0.0
    %1381 = vmatpush1.msra.mxu0 %v1080
    %1382 = vmatprep.subr.mxu0 0.0
    %1383 = vmatpush2.msra.mxu0 0.0
    %1384 = vmatprep.subr.mxu0 0.0
    %1385 = vmatpush2.msra.mxu0 0.0
    %1386 = vmatprep.subr.mxu0 0.0
    %1387 = vmatpush2.msra.mxu0 0.0
    %1388 = vmatprep.subr.mxu0 0.0
    %1389 = vmatpush2.msra.mxu0 0.0
    %1390 = vmatprep.subr.mxu0 0.0
    %1391 = vmatpush2.msra.mxu0 0.0
    %1392 = vmatprep.subr.mxu0 0.0
    %1393 = vmatpush2.msra.mxu0 0.0
    %1394 = vmatprep.subr.mxu0 0.0
    %1395 = vmatpush2.msra.mxu0 0.0
    %1396 = vmatprep.subr.mxu0 0.0
    %1397 = vmatpush2.msra.mxu0 0.0
    %1398 = vmatprep.subr.mxu0 0.0
    %1399 = vmatpush2.msra.mxu0 0.0
    %1400 = vmatprep.subr.mxu0 0.0
    %1401 = vmatpush2.msra.mxu0 0.0
    %1402 = vmatprep.subr.mxu0 0.0
    %1403 = vmatpush2.msra.mxu0 0.0
    %1404 = vmatprep.subr.mxu0 0.0
    %1405 = vmatpush2.msra.mxu0 0.0
    %1406 = vmatprep.subr.mxu0 0.0
    %1407 = vmatpush2.msra.mxu0 0.0
    %1408 = vmatprep.subr.mxu0 0.0
    %1409 = vmatpush2.msra.mxu0 0.0
    %1410 = vmatprep.subr.mxu0 0.0
    %1411 = vmatpush2.msra.mxu0 0.0
    %1412 = vmatprep.subr.mxu0 0.0
    %1413 = vmatpush2.msra.mxu0 0.0
    %1414 = vmatprep.mubr.f32.mxu0 0.0
    %1415 = vmatmul.mubr.f32.gmra.mxu0 %v1348
    %v1416 = vpop.f32.mrf.mxu0
    %v1417 = vadd.f32 %v1089, %v1416
    %v1418 = vpop.f32.mrf.mxu0
    %1419 = vdwg.mxu0
    %v1420 = vadd.f32 %v1344, %v1417
    %v1421 = vxor.u32 %v1420, 2147483648
    %v1422 = vmul.f32 %v1421, 1.442695
    %v1423 = vpow.pop %v1422
    %v1424 = vadd.f32 %v1423, 1.0
    %v1425 = vrcp.pop %v1424
    %v1426 = vmul.f32 1.0, %v1425
    %1428 = vrot.lane.b32.xlu0 %v1417, 64
    %v1429 = vpop.permute.xlu0 %1428
    %v1431 = vmul.f32 %v1426, %v1429
    %1433 = vrot.lane.b32.xlu0 %v1431, 64
    %v1434 = vpop.permute.xlu0 %1433
    %v1436 = vadd.f32 %v1344, %v1434
    %v1437 = vtanh.pop %v1436
    %v1438 = vsub.f32 1.0, %v1426
    %1440 = vrot.lane.b32.xlu0 %v1437, 96
    %v1441 = vpop.permute.xlu0 %1440
    %v1443 = vmul.f32 %v1438, %v1441
    %v1444 = vmul.f32 %v1426, %v1343
    %v1445 = vadd.f32 %v1443, %v1444
    %v1446 = vld [vmem:[%s444] sm:$0xff]
    %1448 = vrot.lane.b32.xlu0 %v1445, 96
    %v1449 = vpop.permute.xlu0 %1448
    %v1450 = vsel %vm233, %v1449, 0
    %1452 = vmatprep.subr.mxu0 0.0
    %1453 = vmatpush1.msra.mxu0 0.0
    %1454 = vmatprep.subr.mxu0 0.0
    %1455 = vmatpush1.msra.mxu0 0.0
    %1456 = vmatprep.subr.mxu0 0.0
    %1457 = vmatpush1.msra.mxu0 0.0
    %1458 = vmatprep.subr.mxu0 0.0
    %1459 = vmatpush1.msra.mxu0 0.0
    %1460 = vmatprep.subr.mxu0 0.0
    %1461 = vmatpush1.msra.mxu0 0.0
    %1462 = vmatprep.subr.mxu0 0.0
    %1463 = vmatpush1.msra.mxu0 0.0
    %1464 = vmatprep.subr.mxu0 0.0
    %1465 = vmatpush1.msra.mxu0 0.0
    %1466 = vmatprep.subr.mxu0 0.0
    %1467 = vmatpush1.msra.mxu0 0.0
    %1468 = vmatprep.subr.mxu0 0.0
    %1469 = vmatpush1.msra.mxu0 0.0
    %1470 = vmatprep.subr.mxu0 0.0
    %1471 = vmatpush1.msra.mxu0 0.0
    %1472 = vmatprep.subr.mxu0 0.0
    %1473 = vmatpush1.msra.mxu0 0.0
    %1474 = vmatprep.subr.mxu0 0.0
    %1475 = vmatpush1.msra.mxu0 0.0
    %1476 = vmatprep.subr.mxu0 0.0
    %1477 = vmatpush1.msra.mxu0 %v1083
    %1478 = vmatprep.subr.mxu0 0.0
    %1479 = vmatpush1.msra.mxu0 %v1082
    %1480 = vmatprep.subr.mxu0 0.0
    %1481 = vmatpush1.msra.mxu0 %v1081
    %1482 = vmatprep.subr.mxu0 0.0
    %1483 = vmatpush1.msra.mxu0 %v1080
    %1484 = vmatprep.subr.mxu0 0.0
    %1485 = vmatpush2.msra.mxu0 0.0
    %1486 = vmatprep.subr.mxu0 0.0
    %1487 = vmatpush2.msra.mxu0 0.0
    %1488 = vmatprep.subr.mxu0 0.0
    %1489 = vmatpush2.msra.mxu0 0.0
    %1490 = vmatprep.subr.mxu0 0.0
    %1491 = vmatpush2.msra.mxu0 0.0
    %1492 = vmatprep.subr.mxu0 0.0
    %1493 = vmatpush2.msra.mxu0 0.0
    %1494 = vmatprep.subr.mxu0 0.0
    %1495 = vmatpush2.msra.mxu0 0.0
    %1496 = vmatprep.subr.mxu0 0.0
    %1497 = vmatpush2.msra.mxu0 0.0
    %1498 = vmatprep.subr.mxu0 0.0
    %1499 = vmatpush2.msra.mxu0 0.0
    %1500 = vmatprep.subr.mxu0 0.0
    %1501 = vmatpush2.msra.mxu0 0.0
    %1502 = vmatprep.subr.mxu0 0.0
    %1503 = vmatpush2.msra.mxu0 0.0
    %1504 = vmatprep.subr.mxu0 0.0
    %1505 = vmatpush2.msra.mxu0 0.0
    %1506 = vmatprep.subr.mxu0 0.0
    %1507 = vmatpush2.msra.mxu0 0.0
    %1508 = vmatprep.subr.mxu0 0.0
    %1509 = vmatpush2.msra.mxu0 0.0
    %1510 = vmatprep.subr.mxu0 0.0
    %1511 = vmatpush2.msra.mxu0 0.0
    %1512 = vmatprep.subr.mxu0 0.0
    %1513 = vmatpush2.msra.mxu0 0.0
    %1514 = vmatprep.subr.mxu0 0.0
    %1515 = vmatpush2.msra.mxu0 0.0
    %1516 = vmatprep.mubr.f32.mxu0 0.0
    %1517 = vmatmul.mubr.f32.gmra.mxu0 %v1450
    %v1518 = vpop.f32.mrf.mxu0
    %v1519 = vadd.f32 %v1089, %v1518
    %v1520 = vpop.f32.mrf.mxu0
    %1521 = vdwg.mxu0
    %v1522 = vadd.f32 %v1446, %v1519
    %v1523 = vxor.u32 %v1522, 2147483648
    %v1524 = vmul.f32 %v1523, 1.442695
    %v1525 = vpow.pop %v1524
    %v1526 = vadd.f32 %v1525, 1.0
    %v1527 = vrcp.pop %v1526
    %v1528 = vmul.f32 1.0, %v1527
    %1530 = vrot.lane.b32.xlu0 %v1519, 64
    %v1531 = vpop.permute.xlu0 %1530
    %v1533 = vmul.f32 %v1528, %v1531
    %1535 = vrot.lane.b32.xlu0 %v1533, 64
    %v1536 = vpop.permute.xlu0 %1535
    %v1538 = vadd.f32 %v1446, %v1536
    %v1539 = vtanh.pop %v1538
    %v1540 = vsub.f32 1.0, %v1528
    %1542 = vrot.lane.b32.xlu0 %v1539, 96
    %v1543 = vpop.permute.xlu0 %1542
    %v1545 = vmul.f32 %v1540, %v1543
    %v1546 = vmul.f32 %v1528, %v1445
    %v1547 = vadd.f32 %v1545, %v1546
    %v1548 = vld [vmem:[%s550] sm:$0xff]
    %1550 = vrot.lane.b32.xlu0 %v1547, 96
    %v1551 = vpop.permute.xlu0 %1550
    %v1552 = vsel %vm233, %v1551, 0
    %1554 = vmatprep.subr.mxu0 0.0
    %1555 = vmatpush1.msra.mxu0 0.0
    %1556 = vmatprep.subr.mxu0 0.0
    %1557 = vmatpush1.msra.mxu0 0.0
    %1558 = vmatprep.subr.mxu0 0.0
    %1559 = vmatpush1.msra.mxu0 0.0
    %1560 = vmatprep.subr.mxu0 0.0
    %1561 = vmatpush1.msra.mxu0 0.0
    %1562 = vmatprep.subr.mxu0 0.0
    %1563 = vmatpush1.msra.mxu0 0.0
    %1564 = vmatprep.subr.mxu0 0.0
    %1565 = vmatpush1.msra.mxu0 0.0
    %1566 = vmatprep.subr.mxu0 0.0
    %1567 = vmatpush1.msra.mxu0 0.0
    %1568 = vmatprep.subr.mxu0 0.0
    %1569 = vmatpush1.msra.mxu0 0.0
    %1570 = vmatprep.subr.mxu0 0.0
    %1571 = vmatpush1.msra.mxu0 0.0
    %1572 = vmatprep.subr.mxu0 0.0
    %1573 = vmatpush1.msra.mxu0 0.0
    %1574 = vmatprep.subr.mxu0 0.0
    %1575 = vmatpush1.msra.mxu0 0.0
    %1576 = vmatprep.subr.mxu0 0.0
    %1577 = vmatpush1.msra.mxu0 0.0
    %1578 = vmatprep.subr.mxu0 0.0
    %1579 = vmatpush1.msra.mxu0 %v1083
    %1580 = vmatprep.subr.mxu0 0.0
    %1581 = vmatpush1.msra.mxu0 %v1082
    %1582 = vmatprep.subr.mxu0 0.0
    %1583 = vmatpush1.msra.mxu0 %v1081
    %1584 = vmatprep.subr.mxu0 0.0
    %1585 = vmatpush1.msra.mxu0 %v1080
    %1586 = vmatprep.subr.mxu0 0.0
    %1587 = vmatpush2.msra.mxu0 0.0
    %1588 = vmatprep.subr.mxu0 0.0
    %1589 = vmatpush2.msra.mxu0 0.0
    %1590 = vmatprep.subr.mxu0 0.0
    %1591 = vmatpush2.msra.mxu0 0.0
    %1592 = vmatprep.subr.mxu0 0.0
    %1593 = vmatpush2.msra.mxu0 0.0
    %1594 = vmatprep.subr.mxu0 0.0
    %1595 = vmatpush2.msra.mxu0 0.0
    %1596 = vmatprep.subr.mxu0 0.0
    %1597 = vmatpush2.msra.mxu0 0.0
    %1598 = vmatprep.subr.mxu0 0.0
    %1599 = vmatpush2.msra.mxu0 0.0
    %1600 = vmatprep.subr.mxu0 0.0
    %1601 = vmatpush2.msra.mxu0 0.0
    %1602 = vmatprep.subr.mxu0 0.0
    %1603 = vmatpush2.msra.mxu0 0.0
    %1604 = vmatprep.subr.mxu0 0.0
    %1605 = vmatpush2.msra.mxu0 0.0
    %1606 = vmatprep.subr.mxu0 0.0
    %1607 = vmatpush2.msra.mxu0 0.0
    %1608 = vmatprep.subr.mxu0 0.0
    %1609 = vmatpush2.msra.mxu0 0.0
    %1610 = vmatprep.subr.mxu0 0.0
    %1611 = vmatpush2.msra.mxu0 0.0
    %1612 = vmatprep.subr.mxu0 0.0
    %1613 = vmatpush2.msra.mxu0 0.0
    %1614 = vmatprep.subr.mxu0 0.0
    %1615 = vmatpush2.msra.mxu0 0.0
    %1616 = vmatprep.subr.mxu0 0.0
    %1617 = vmatpush2.msra.mxu0 0.0
    %1618 = vmatprep.mubr.f32.mxu0 0.0
    %1619 = vmatmul.mubr.f32.gmra.mxu0 %v1552
    %v1620 = vpop.f32.mrf.mxu0
    %v1621 = vadd.f32 %v1089, %v1620
    %v1622 = vpop.f32.mrf.mxu0
    %1623 = vdwg.mxu0
    %v1624 = vadd.f32 %v1548, %v1621
    %v1625 = vxor.u32 %v1624, 2147483648
    %v1626 = vmul.f32 %v1625, 1.442695
    %v1627 = vpow.pop %v1626
    %v1628 = vadd.f32 %v1627, 1.0
    %v1629 = vrcp.pop %v1628
    %v1630 = vmul.f32 1.0, %v1629
    %1632 = vrot.lane.b32.xlu0 %v1621, 64
    %v1633 = vpop.permute.xlu0 %1632
    %v1635 = vmul.f32 %v1630, %v1633
    %1637 = vrot.lane.b32.xlu0 %v1635, 64
    %v1638 = vpop.permute.xlu0 %1637
    %v1640 = vadd.f32 %v1548, %v1638
    %v1641 = vtanh.pop %v1640
    %v1642 = vsub.f32 1.0, %v1630
    %1644 = vrot.lane.b32.xlu0 %v1641, 96
    %v1645 = vpop.permute.xlu0 %1644
    %v1647 = vmul.f32 %v1642, %v1645
    %v1648 = vmul.f32 %v1630, %v1547
    %v1649 = vadd.f32 %v1647, %v1648
    %v1650 = vld [vmem:[%s656] sm:$0xff]
    %1652 = vrot.lane.b32.xlu0 %v1649, 96
    %v1653 = vpop.permute.xlu0 %1652
    %v1654 = vsel %vm233, %v1653, 0
    %1656 = vmatprep.subr.mxu0 0.0
    %1657 = vmatpush1.msra.mxu0 0.0
    %1658 = vmatprep.subr.mxu0 0.0
    %1659 = vmatpush1.msra.mxu0 0.0
    %1660 = vmatprep.subr.mxu0 0.0
    %1661 = vmatpush1.msra.mxu0 0.0
    %1662 = vmatprep.subr.mxu0 0.0
    %1663 = vmatpush1.msra.mxu0 0.0
    %1664 = vmatprep.subr.mxu0 0.0
    %1665 = vmatpush1.msra.mxu0 0.0
    %1666 = vmatprep.subr.mxu0 0.0
    %1667 = vmatpush1.msra.mxu0 0.0
    %1668 = vmatprep.subr.mxu0 0.0
    %1669 = vmatpush1.msra.mxu0 0.0
    %1670 = vmatprep.subr.mxu0 0.0
    %1671 = vmatpush1.msra.mxu0 0.0
    %1672 = vmatprep.subr.mxu0 0.0
    %1673 = vmatpush1.msra.mxu0 0.0
    %1674 = vmatprep.subr.mxu0 0.0
    %1675 = vmatpush1.msra.mxu0 0.0
    %1676 = vmatprep.subr.mxu0 0.0
    %1677 = vmatpush1.msra.mxu0 0.0
    %1678 = vmatprep.subr.mxu0 0.0
    %1679 = vmatpush1.msra.mxu0 0.0
    %1680 = vmatprep.subr.mxu0 0.0
    %1681 = vmatpush1.msra.mxu0 %v1083
    %1682 = vmatprep.subr.mxu0 0.0
    %1683 = vmatpush1.msra.mxu0 %v1082
    %1684 = vmatprep.subr.mxu0 0.0
    %1685 = vmatpush1.msra.mxu0 %v1081
    %1686 = vmatprep.subr.mxu0 0.0
    %1687 = vmatpush1.msra.mxu0 %v1080
    %1688 = vmatprep.subr.mxu0 0.0
    %1689 = vmatpush2.msra.mxu0 0.0
    %1690 = vmatprep.subr.mxu0 0.0
    %1691 = vmatpush2.msra.mxu0 0.0
    %1692 = vmatprep.subr.mxu0 0.0
    %1693 = vmatpush2.msra.mxu0 0.0
    %1694 = vmatprep.subr.mxu0 0.0
    %1695 = vmatpush2.msra.mxu0 0.0
    %1696 = vmatprep.subr.mxu0 0.0
    %1697 = vmatpush2.msra.mxu0 0.0
    %1698 = vmatprep.subr.mxu0 0.0
    %1699 = vmatpush2.msra.mxu0 0.0
    %1700 = vmatprep.subr.mxu0 0.0
    %1701 = vmatpush2.msra.mxu0 0.0
    %1702 = vmatprep.subr.mxu0 0.0
    %1703 = vmatpush2.msra.mxu0 0.0
    %1704 = vmatprep.subr.mxu0 0.0
    %1705 = vmatpush2.msra.mxu0 0.0
    %1706 = vmatprep.subr.mxu0 0.0
    %1707 = vmatpush2.msra.mxu0 0.0
    %1708 = vmatprep.subr.mxu0 0.0
    %1709 = vmatpush2.msra.mxu0 0.0
    %1710 = vmatprep.subr.mxu0 0.0
    %1711 = vmatpush2.msra.mxu0 0.0
    %1712 = vmatprep.subr.mxu0 0.0
    %1713 = vmatpush2.msra.mxu0 0.0
    %1714 = vmatprep.subr.mxu0 0.0
    %1715 = vmatpush2.msra.mxu0 0.0
    %1716 = vmatprep.subr.mxu0 0.0
    %1717 = vmatpush2.msra.mxu0 0.0
    %1718 = vmatprep.subr.mxu0 0.0
    %1719 = vmatpush2.msra.mxu0 0.0
    %1720 = vmatprep.mubr.f32.mxu0 0.0
    %1721 = vmatmul.mubr.f32.gmra.mxu0 %v1654
    %v1722 = vpop.f32.mrf.mxu0
    %v1723 = vadd.f32 %v1089, %v1722
    %v1724 = vpop.f32.mrf.mxu0
    %1725 = vdwg.mxu0
    %v1726 = vadd.f32 %v1650, %v1723
    %v1727 = vxor.u32 %v1726, 2147483648
    %v1728 = vmul.f32 %v1727, 1.442695
    %v1729 = vpow.pop %v1728
    %v1730 = vadd.f32 %v1729, 1.0
    %v1731 = vrcp.pop %v1730
    %v1732 = vmul.f32 1.0, %v1731
    %1734 = vrot.lane.b32.xlu0 %v1723, 64
    %v1735 = vpop.permute.xlu0 %1734
    %v1737 = vmul.f32 %v1732, %v1735
    %1739 = vrot.lane.b32.xlu0 %v1737, 64
    %v1740 = vpop.permute.xlu0 %1739
    %v1742 = vadd.f32 %v1650, %v1740
    %v1743 = vtanh.pop %v1742
    %v1744 = vsub.f32 1.0, %v1732
    %1746 = vrot.lane.b32.xlu0 %v1743, 96
    %v1747 = vpop.permute.xlu0 %1746
    %v1749 = vmul.f32 %v1744, %v1747
    %v1750 = vmul.f32 %v1732, %v1649
    %v1751 = vadd.f32 %v1749, %v1750
    %v1752 = vld [vmem:[%s762] sm:$0xff]
    %1754 = vrot.lane.b32.xlu0 %v1751, 96
    %v1755 = vpop.permute.xlu0 %1754
    %v1756 = vsel %vm233, %v1755, 0
    %1758 = vmatprep.subr.mxu0 0.0
    %1759 = vmatpush1.msra.mxu0 0.0
    %1760 = vmatprep.subr.mxu0 0.0
    %1761 = vmatpush1.msra.mxu0 0.0
    %1762 = vmatprep.subr.mxu0 0.0
    %1763 = vmatpush1.msra.mxu0 0.0
    %1764 = vmatprep.subr.mxu0 0.0
    %1765 = vmatpush1.msra.mxu0 0.0
    %1766 = vmatprep.subr.mxu0 0.0
    %1767 = vmatpush1.msra.mxu0 0.0
    %1768 = vmatprep.subr.mxu0 0.0
    %1769 = vmatpush1.msra.mxu0 0.0
    %1770 = vmatprep.subr.mxu0 0.0
    %1771 = vmatpush1.msra.mxu0 0.0
    %1772 = vmatprep.subr.mxu0 0.0
    %1773 = vmatpush1.msra.mxu0 0.0
    %1774 = vmatprep.subr.mxu0 0.0
    %1775 = vmatpush1.msra.mxu0 0.0
    %1776 = vmatprep.subr.mxu0 0.0
    %1777 = vmatpush1.msra.mxu0 0.0
    %1778 = vmatprep.subr.mxu0 0.0
    %1779 = vmatpush1.msra.mxu0 0.0
    %1780 = vmatprep.subr.mxu0 0.0
    %1781 = vmatpush1.msra.mxu0 0.0
    %1782 = vmatprep.subr.mxu0 0.0
    %1783 = vmatpush1.msra.mxu0 %v1083
    %1784 = vmatprep.subr.mxu0 0.0
    %1785 = vmatpush1.msra.mxu0 %v1082
    %1786 = vmatprep.subr.mxu0 0.0
    %1787 = vmatpush1.msra.mxu0 %v1081
    %1788 = vmatprep.subr.mxu0 0.0
    %1789 = vmatpush1.msra.mxu0 %v1080
    %1790 = vmatprep.subr.mxu0 0.0
    %1791 = vmatpush2.msra.mxu0 0.0
    %1792 = vmatprep.subr.mxu0 0.0
    %1793 = vmatpush2.msra.mxu0 0.0
    %1794 = vmatprep.subr.mxu0 0.0
    %1795 = vmatpush2.msra.mxu0 0.0
    %1796 = vmatprep.subr.mxu0 0.0
    %1797 = vmatpush2.msra.mxu0 0.0
    %1798 = vmatprep.subr.mxu0 0.0
    %1799 = vmatpush2.msra.mxu0 0.0
    %1800 = vmatprep.subr.mxu0 0.0
    %1801 = vmatpush2.msra.mxu0 0.0
    %1802 = vmatprep.subr.mxu0 0.0
    %1803 = vmatpush2.msra.mxu0 0.0
    %1804 = vmatprep.subr.mxu0 0.0
    %1805 = vmatpush2.msra.mxu0 0.0
    %1806 = vmatprep.subr.mxu0 0.0
    %1807 = vmatpush2.msra.mxu0 0.0
    %1808 = vmatprep.subr.mxu0 0.0
    %1809 = vmatpush2.msra.mxu0 0.0
    %1810 = vmatprep.subr.mxu0 0.0
    %1811 = vmatpush2.msra.mxu0 0.0
    %1812 = vmatprep.subr.mxu0 0.0
    %1813 = vmatpush2.msra.mxu0 0.0
    %1814 = vmatprep.subr.mxu0 0.0
    %1815 = vmatpush2.msra.mxu0 0.0
    %1816 = vmatprep.subr.mxu0 0.0
    %1817 = vmatpush2.msra.mxu0 0.0
    %1818 = vmatprep.subr.mxu0 0.0
    %1819 = vmatpush2.msra.mxu0 0.0
    %1820 = vmatprep.subr.mxu0 0.0
    %1821 = vmatpush2.msra.mxu0 0.0
    %1822 = vmatprep.mubr.f32.mxu0 0.0
    %1823 = vmatmul.mubr.f32.gmra.mxu0 %v1756
    %v1824 = vpop.f32.mrf.mxu0
    %v1825 = vadd.f32 %v1089, %v1824
    %v1826 = vpop.f32.mrf.mxu0
    %1827 = vdwg.mxu0
    %v1828 = vadd.f32 %v1752, %v1825
    %v1829 = vxor.u32 %v1828, 2147483648
    %v1830 = vmul.f32 %v1829, 1.442695
    %v1831 = vpow.pop %v1830
    %v1832 = vadd.f32 %v1831, 1.0
    %v1833 = vrcp.pop %v1832
    %v1834 = vmul.f32 1.0, %v1833
    %1836 = vrot.lane.b32.xlu0 %v1825, 64
    %v1837 = vpop.permute.xlu0 %1836
    %v1839 = vmul.f32 %v1834, %v1837
    %1841 = vrot.lane.b32.xlu0 %v1839, 64
    %v1842 = vpop.permute.xlu0 %1841
    %v1844 = vadd.f32 %v1752, %v1842
    %v1845 = vtanh.pop %v1844
    %v1846 = vsub.f32 1.0, %v1834
    %1848 = vrot.lane.b32.xlu0 %v1845, 96
    %v1849 = vpop.permute.xlu0 %1848
    %v1851 = vmul.f32 %v1846, %v1849
    %v1852 = vmul.f32 %v1834, %v1751
    %v1853 = vadd.f32 %v1851, %v1852
    %v1854 = vld [vmem:[%s868] sm:$0xff]
    %1856 = vrot.lane.b32.xlu0 %v1853, 96
    %v1857 = vpop.permute.xlu0 %1856
    %v1858 = vsel %vm233, %v1857, 0
    %1860 = vmatprep.subr.mxu0 0.0
    %1861 = vmatpush1.msra.mxu0 0.0
    %1862 = vmatprep.subr.mxu0 0.0
    %1863 = vmatpush1.msra.mxu0 0.0
    %1864 = vmatprep.subr.mxu0 0.0
    %1865 = vmatpush1.msra.mxu0 0.0
    %1866 = vmatprep.subr.mxu0 0.0
    %1867 = vmatpush1.msra.mxu0 0.0
    %1868 = vmatprep.subr.mxu0 0.0
    %1869 = vmatpush1.msra.mxu0 0.0
    %1870 = vmatprep.subr.mxu0 0.0
    %1871 = vmatpush1.msra.mxu0 0.0
    %1872 = vmatprep.subr.mxu0 0.0
    %1873 = vmatpush1.msra.mxu0 0.0
    %1874 = vmatprep.subr.mxu0 0.0
    %1875 = vmatpush1.msra.mxu0 0.0
    %1876 = vmatprep.subr.mxu0 0.0
    %1877 = vmatpush1.msra.mxu0 0.0
    %1878 = vmatprep.subr.mxu0 0.0
    %1879 = vmatpush1.msra.mxu0 0.0
    %1880 = vmatprep.subr.mxu0 0.0
    %1881 = vmatpush1.msra.mxu0 0.0
    %1882 = vmatprep.subr.mxu0 0.0
    %1883 = vmatpush1.msra.mxu0 0.0
    %1884 = vmatprep.subr.mxu0 0.0
    %1885 = vmatpush1.msra.mxu0 %v1083
    %1886 = vmatprep.subr.mxu0 0.0
    %1887 = vmatpush1.msra.mxu0 %v1082
    %1888 = vmatprep.subr.mxu0 0.0
    %1889 = vmatpush1.msra.mxu0 %v1081
    %1890 = vmatprep.subr.mxu0 0.0
    %1891 = vmatpush1.msra.mxu0 %v1080
    %1892 = vmatprep.subr.mxu0 0.0
    %1893 = vmatpush2.msra.mxu0 0.0
    %1894 = vmatprep.subr.mxu0 0.0
    %1895 = vmatpush2.msra.mxu0 0.0
    %1896 = vmatprep.subr.mxu0 0.0
    %1897 = vmatpush2.msra.mxu0 0.0
    %1898 = vmatprep.subr.mxu0 0.0
    %1899 = vmatpush2.msra.mxu0 0.0
    %1900 = vmatprep.subr.mxu0 0.0
    %1901 = vmatpush2.msra.mxu0 0.0
    %1902 = vmatprep.subr.mxu0 0.0
    %1903 = vmatpush2.msra.mxu0 0.0
    %1904 = vmatprep.subr.mxu0 0.0
    %1905 = vmatpush2.msra.mxu0 0.0
    %1906 = vmatprep.subr.mxu0 0.0
    %1907 = vmatpush2.msra.mxu0 0.0
    %1908 = vmatprep.subr.mxu0 0.0
    %1909 = vmatpush2.msra.mxu0 0.0
    %1910 = vmatprep.subr.mxu0 0.0
    %1911 = vmatpush2.msra.mxu0 0.0
    %1912 = vmatprep.subr.mxu0 0.0
    %1913 = vmatpush2.msra.mxu0 0.0
    %1914 = vmatprep.subr.mxu0 0.0
    %1915 = vmatpush2.msra.mxu0 0.0
    %1916 = vmatprep.subr.mxu0 0.0
    %1917 = vmatpush2.msra.mxu0 0.0
    %1918 = vmatprep.subr.mxu0 0.0
    %1919 = vmatpush2.msra.mxu0 0.0
    %1920 = vmatprep.subr.mxu0 0.0
    %1921 = vmatpush2.msra.mxu0 0.0
    %1922 = vmatprep.subr.mxu0 0.0
    %1923 = vmatpush2.msra.mxu0 0.0
    %1924 = vmatprep.mubr.f32.mxu0 0.0
    %1925 = vmatmul.mubr.f32.gmra.mxu0 %v1858
    %v1926 = vpop.f32.mrf.mxu0
    %v1927 = vadd.f32 %v1089, %v1926
    %v1928 = vpop.f32.mrf.mxu0
    %1929 = vdwg.mxu0
    %v1930 = vadd.f32 %v1854, %v1927
    %v1931 = vxor.u32 %v1930, 2147483648
    %v1932 = vmul.f32 %v1931, 1.442695
    %v1933 = vpow.pop %v1932
    %v1934 = vadd.f32 %v1933, 1.0
    %v1935 = vrcp.pop %v1934
    %v1936 = vmul.f32 1.0, %v1935
    %1938 = vrot.lane.b32.xlu0 %v1927, 64
    %v1939 = vpop.permute.xlu0 %1938
    %v1941 = vmul.f32 %v1936, %v1939
    %1943 = vrot.lane.b32.xlu0 %v1941, 64
    %v1944 = vpop.permute.xlu0 %1943
    %v1946 = vadd.f32 %v1854, %v1944
    %v1947 = vtanh.pop %v1946
    %v1948 = vsub.f32 1.0, %v1936
    %1950 = vrot.lane.b32.xlu0 %v1947, 96
    %v1951 = vpop.permute.xlu0 %1950
    %v1953 = vmul.f32 %v1948, %v1951
    %v1954 = vmul.f32 %v1936, %v1853
    %v1955 = vadd.f32 %v1953, %v1954
    %v1956 = vld [vmem:[%s974] sm:$0xff]
    %1958 = vrot.lane.b32.xlu0 %v1955, 96
    %v1959 = vpop.permute.xlu0 %1958
    %v1960 = vsel %vm233, %v1959, 0
    %1962 = vmatprep.subr.mxu0 0.0
    %1963 = vmatpush1.msra.mxu0 0.0
    %1964 = vmatprep.subr.mxu0 0.0
    %1965 = vmatpush1.msra.mxu0 0.0
    %1966 = vmatprep.subr.mxu0 0.0
    %1967 = vmatpush1.msra.mxu0 0.0
    %1968 = vmatprep.subr.mxu0 0.0
    %1969 = vmatpush1.msra.mxu0 0.0
    %1970 = vmatprep.subr.mxu0 0.0
    %1971 = vmatpush1.msra.mxu0 0.0
    %1972 = vmatprep.subr.mxu0 0.0
    %1973 = vmatpush1.msra.mxu0 0.0
    %1974 = vmatprep.subr.mxu0 0.0
    %1975 = vmatpush1.msra.mxu0 0.0
    %1976 = vmatprep.subr.mxu0 0.0
    %1977 = vmatpush1.msra.mxu0 0.0
    %1978 = vmatprep.subr.mxu0 0.0
    %1979 = vmatpush1.msra.mxu0 0.0
    %1980 = vmatprep.subr.mxu0 0.0
    %1981 = vmatpush1.msra.mxu0 0.0
    %1982 = vmatprep.subr.mxu0 0.0
    %1983 = vmatpush1.msra.mxu0 0.0
    %1984 = vmatprep.subr.mxu0 0.0
    %1985 = vmatpush1.msra.mxu0 0.0
    %1986 = vmatprep.subr.mxu0 0.0
    %1987 = vmatpush1.msra.mxu0 %v1083
    %1988 = vmatprep.subr.mxu0 0.0
    %1989 = vmatpush1.msra.mxu0 %v1082
    %1990 = vmatprep.subr.mxu0 0.0
    %1991 = vmatpush1.msra.mxu0 %v1081
    %1992 = vmatprep.subr.mxu0 0.0
    %1993 = vmatpush1.msra.mxu0 %v1080
    %1994 = vmatprep.subr.mxu0 0.0
    %1995 = vmatpush2.msra.mxu0 0.0
    %1996 = vmatprep.subr.mxu0 0.0
    %1997 = vmatpush2.msra.mxu0 0.0
    %1998 = vmatprep.subr.mxu0 0.0
    %1999 = vmatpush2.msra.mxu0 0.0
    %2000 = vmatprep.subr.mxu0 0.0
    %2001 = vmatpush2.msra.mxu0 0.0
    %2002 = vmatprep.subr.mxu0 0.0
    %2003 = vmatpush2.msra.mxu0 0.0
    %2004 = vmatprep.subr.mxu0 0.0
    %2005 = vmatpush2.msra.mxu0 0.0
    %2006 = vmatprep.subr.mxu0 0.0
    %2007 = vmatpush2.msra.mxu0 0.0
    %2008 = vmatprep.subr.mxu0 0.0
    %2009 = vmatpush2.msra.mxu0 0.0
    %2010 = vmatprep.subr.mxu0 0.0
    %2011 = vmatpush2.msra.mxu0 0.0
    %2012 = vmatprep.subr.mxu0 0.0
    %2013 = vmatpush2.msra.mxu0 0.0
    %2014 = vmatprep.subr.mxu0 0.0
    %2015 = vmatpush2.msra.mxu0 0.0
    %2016 = vmatprep.subr.mxu0 0.0
    %2017 = vmatpush2.msra.mxu0 0.0
    %2018 = vmatprep.subr.mxu0 0.0
    %2019 = vmatpush2.msra.mxu0 0.0
    %2020 = vmatprep.subr.mxu0 0.0
    %2021 = vmatpush2.msra.mxu0 0.0
    %2022 = vmatprep.subr.mxu0 0.0
    %2023 = vmatpush2.msra.mxu0 0.0
    %2024 = vmatprep.subr.mxu0 0.0
    %2025 = vmatpush2.msra.mxu0 0.0
    %2026 = vmatprep.mubr.f32.mxu0 0.0
    %2027 = vmatmul.mubr.f32.gmra.mxu0 %v1960
    %v2028 = vpop.f32.mrf.mxu0
    %v2029 = vadd.f32 %v1089, %v2028
    %v2030 = vpop.f32.mrf.mxu0
    %2031 = vdwg.mxu0
    %v2032 = vadd.f32 %v1956, %v2029
    %v2033 = vxor.u32 %v2032, 2147483648
    %v2034 = vmul.f32 %v2033, 1.442695
    %v2035 = vpow.pop %v2034
    %v2036 = vadd.f32 %v2035, 1.0
    %v2037 = vrcp.pop %v2036
    %v2038 = vmul.f32 1.0, %v2037
    %2040 = vrot.lane.b32.xlu0 %v2029, 64
    %v2041 = vpop.permute.xlu0 %2040
    %v2043 = vmul.f32 %v2038, %v2041
    %2045 = vrot.lane.b32.xlu0 %v2043, 64
    %v2046 = vpop.permute.xlu0 %2045
    %v2048 = vadd.f32 %v1956, %v2046
    %v2049 = vtanh.pop %v2048
    %v2050 = vsub.f32 1.0, %v2038
    %2052 = vrot.lane.b32.xlu0 %v2049, 96
    %v2053 = vpop.permute.xlu0 %2052
    %v2055 = vmul.f32 %v2050, %v2053
    %v2056 = vmul.f32 %v2038, %v1955
    %v2057 = vadd.f32 %v2055, %v2056
    %v2058 = vld [vmem:[#allocation7] sm:$0xff]
    %v2059 = vld [vmem:[#allocation7 + $0x8] sm:$0xff]
    %v2060 = vld [vmem:[#allocation7 + $0x10] sm:$0xff]
    %v2061 = vld [vmem:[#allocation7 + $0x18] sm:$0xff]
    %v2062 = vld [vmem:[%s10] sm:$0x1]
    %v2064 = vlaneseq
    %v2065 = vshrl.u32 %v2064, 7
    %v2066 = vsub.s32 0, %v2065
    %v2067 = vrot.slane %v2062, %v2066
    %2070 = vrot.lane.b32.xlu0 %v2057, 96
    %v2071 = vpop.permute.xlu0 %2070
    %v2072 = vsel %vm233, %v2071, 0
    %2074 = vmatprep.subr.mxu0 0.0
    %2075 = vmatpush1.msra.mxu0 0.0
    %2076 = vmatprep.subr.mxu0 0.0
    %2077 = vmatpush1.msra.mxu0 0.0
    %2078 = vmatprep.subr.mxu0 0.0
    %2079 = vmatpush1.msra.mxu0 0.0
    %2080 = vmatprep.subr.mxu0 0.0
    %2081 = vmatpush1.msra.mxu0 0.0
    %2082 = vmatprep.subr.mxu0 0.0
    %2083 = vmatpush1.msra.mxu0 0.0
    %2084 = vmatprep.subr.mxu0 0.0
    %2085 = vmatpush1.msra.mxu0 0.0
    %2086 = vmatprep.subr.mxu0 0.0
    %2087 = vmatpush1.msra.mxu0 0.0
    %2088 = vmatprep.subr.mxu0 0.0
    %2089 = vmatpush1.msra.mxu0 0.0
    %2090 = vmatprep.subr.mxu0 0.0
    %2091 = vmatpush1.msra.mxu0 0.0
    %2092 = vmatprep.subr.mxu0 0.0
    %2093 = vmatpush1.msra.mxu0 0.0
    %2094 = vmatprep.subr.mxu0 0.0
    %2095 = vmatpush1.msra.mxu0 0.0
    %2096 = vmatprep.subr.mxu0 0.0
    %2097 = vmatpush1.msra.mxu0 0.0
    %2098 = vmatprep.subr.mxu0 0.0
    %2099 = vmatpush1.msra.mxu0 %v2061
    %2100 = vmatprep.subr.mxu0 0.0
    %2101 = vmatpush1.msra.mxu0 %v2060
    %2102 = vmatprep.subr.mxu0 0.0
    %2103 = vmatpush1.msra.mxu0 %v2059
    %2104 = vmatprep.subr.mxu0 0.0
    %2105 = vmatpush1.msra.mxu0 %v2058
    %2106 = vmatprep.subr.mxu0 0.0
    %2107 = vmatpush2.msra.mxu0 0.0
    %2108 = vmatprep.subr.mxu0 0.0
    %2109 = vmatpush2.msra.mxu0 0.0
    %2110 = vmatprep.subr.mxu0 0.0
    %2111 = vmatpush2.msra.mxu0 0.0
    %2112 = vmatprep.subr.mxu0 0.0
    %2113 = vmatpush2.msra.mxu0 0.0
    %2114 = vmatprep.subr.mxu0 0.0
    %2115 = vmatpush2.msra.mxu0 0.0
    %2116 = vmatprep.subr.mxu0 0.0
    %2117 = vmatpush2.msra.mxu0 0.0
    %2118 = vmatprep.subr.mxu0 0.0
    %2119 = vmatpush2.msra.mxu0 0.0
    %2120 = vmatprep.subr.mxu0 0.0
    %2121 = vmatpush2.msra.mxu0 0.0
    %2122 = vmatprep.subr.mxu0 0.0
    %2123 = vmatpush2.msra.mxu0 0.0
    %2124 = vmatprep.subr.mxu0 0.0
    %2125 = vmatpush2.msra.mxu0 0.0
    %2126 = vmatprep.subr.mxu0 0.0
    %2127 = vmatpush2.msra.mxu0 0.0
    %2128 = vmatprep.subr.mxu0 0.0
    %2129 = vmatpush2.msra.mxu0 0.0
    %2130 = vmatprep.subr.mxu0 0.0
    %2131 = vmatpush2.msra.mxu0 0.0
    %2132 = vmatprep.subr.mxu0 0.0
    %2133 = vmatpush2.msra.mxu0 0.0
    %2134 = vmatprep.subr.mxu0 0.0
    %2135 = vmatpush2.msra.mxu0 0.0
    %2136 = vmatprep.subr.mxu0 0.0
    %2137 = vmatpush2.msra.mxu0 0.0
    %2138 = vmatprep.mubr.f32.mxu0 0.0
    %2139 = vmatmul.mubr.f32.gmra.mxu0 %v2072
    %v2140 = vpop.f32.mrf.mxu0
    %v2141 = vadd.f32 %v2067, %v2140
    %v2142 = vpop.f32.mrf.mxu0
    %2143 = vdwg.mxu0
    %2144 = vst [vmem:[#allocation9] sm:$0xff] %v2141
    // Predicated region
    $region54: #{tpu_custom_call.1} parent=1 // pred_check
      _
    $region55: #{tpu_custom_call.1} parent=1 // pred_check_branch
      %2146 = sbr.rel (0) target = $region57
    $region56: #{tpu_custom_call.1} parent=1 // pred_region
      %s2148 = ssub.s32 128, 128
      %2149 = vsyncadd [#allocation6], %s2148
      %s2151 = sshll.u32 [#allocation9], 4
      %s2152 = int_to_ptr.vmem [resolvable:$true] %s2151
      %2154 = dma.vmem_to_hbm [thread:$0]  %s2152, 128, %s11, [#allocation6]
    $region57: #{tpu_custom_call.1} parent=1 // pred_fallthru
      _
    // Predicated region
    $region58: #{tpu_custom_call.1} parent=1 // pred_check
      _
    $region59: #{tpu_custom_call.1} parent=1 // pred_check_branch
      %2156 = sbr.rel (0) target = $region61
    $region60: #{tpu_custom_call.1} parent=1 // pred_region
      %2157 = dma.done [#allocation6], 128
    $region61: #{tpu_custom_call.1} parent=1 // pred_fallthru
      _
    %2158 = vsyncpa [#allocation5], 1
    %2159 = vsyncpa [#allocation8], 1
    %2160 = vsyncpa [#allocation6], 1

</llo_original>
